<compile_context>
chip_gen: v5e
topology: v5e:2x2
jax: 0.10.0
libtpu: 0.0.40
codegen_flags: <defaults>
</compile_context>

<pallas_src>
import functools

import jax
import jax.numpy as jnp
from jax import lax
from jax.experimental import pallas as pl
from jax.experimental.pallas import tpu as pltpu


def _fused_attention_kernel(x_ref, wt_ref, pool_ref, exp_ref,
                            w1_ref, b1_ref, w2_ref, b2_ref,
                            out_ref, *, conv_in_dtype):
    """Whole Attention.forward in one kernel invocation.

    Layouts: x / out are (C, B*HW) (channels on sublanes, batch*spatial on
    lanes); LSTM hidden/cell state are (C, B).  All weights are pre-arranged
    in the wrapper so every matmul is a plain (M,K)@(K,N) dot (no in-kernel
    transposes).
    """
    f32 = jnp.float32
    L = wt_ref.shape[0]
    C = x_ref.shape[0]
    B = pool_ref.shape[1]

    x = x_ref[...]                        # (C, BHW), carried across layers
    pool = pool_ref[...]                  # (BHW, B), 1/HW folded in
    expand = exp_ref[...]                 # (B, BHW)
    w1 = w1_ref[...]                      # blockdiag(wi1^T, wh1^T): (2*C/4, 2C)
    b1 = b1_ref[...]                      # [bi1; bh1]:              (2*C/4, 1)
    w2 = w2_ref[...]                      # [wi2^T | wh2^T]:         (4C, 2*C/4)
    b2 = b2_ref[...]                      # bi2 + bh2:               (4C, 1)

    hx = jnp.zeros((C, B), f32)
    cx = jnp.zeros((C, B), f32)

    # L is a small compile-time constant -> fully unrolled so the scheduler
    # sees the whole chain.  (Switch to lax.fori_loop for large L.)
    for l in range(L):
        wt = wt_ref[l]                    # (C, C) == W^T, static slice

        # ---- big channel-mix 1x1 conv on the MXU (bf16 in, f32 accumulate) --
        x_conv = jnp.dot(wt.astype(conv_in_dtype), x.astype(conv_in_dtype),
                         preferred_element_type=f32)          # (C, BHW)

        # ---- reassociated GlobalAvgPool: pool x (pre-conv, independent of
        #      x_conv), then apply the conv weight to the tiny pooled vector.
        #      Keeps the LSTM critical path off the big conv.  All f32. -------
        pooled = jnp.dot(x, pool, preferred_element_type=f32)      # (C, B)
        seq = jnp.dot(wt, pooled, preferred_element_type=f32)      # (C, B)

        # ---- LSTMCell (nlayers=1) from two small_cell MLPs, merged:
        #      stage 1: blockdiag(wi1^T, wh1^T) @ [seq; ht]   (one dot)
        #      stage 2: [wi2^T | wh2^T] @ relu(stage1)        (one dot) -------
        stacked = jnp.concatenate([seq, hx], axis=0)                # (2C, B)
        h_cat = jnp.maximum(
            jnp.dot(w1, stacked, preferred_element_type=f32) + b1, 0.0)
        gates = jnp.dot(w2, h_cat, preferred_element_type=f32) + b2   # (4C, B)

        # Gate order i, f, c, o along the 4C (sublane) axis; each slice is a
        # C-row (8-aligned) chunk; only the needed transcendental per gate.
        i_g = jax.nn.sigmoid(gates[0 * C:1 * C, :])
        f_g = jax.nn.sigmoid(gates[1 * C:2 * C, :])
        c_g = jnp.tanh(gates[2 * C:3 * C, :])
        o_g = jax.nn.sigmoid(gates[3 * C:4 * C, :])

        cx = f_g * cx + i_g * c_g
        # Faithful to the PyTorch source: nhx = o * sigmoid(ncx), NOT tanh(ncx).
        hx = o_g * jax.nn.sigmoid(cx)

        # ---- x = relu(x * ht.view(B,C,1,1) + org): broadcast ht over the
        #      spatial lanes via a tiny (C,B)@(B,BHW) matmul ------------------
        scale = jnp.dot(hx, expand, preferred_element_type=f32)    # (C, BHW)
        x = jnp.maximum(x_conv * scale + x, 0.0)

    out_ref[...] = x


def attention_forward(x, layer_weights, lstm_params, conv_in_dtype=jnp.bfloat16):
    """Full Attention.forward fused into a single Pallas kernel launch.

    `layer_weights` models the external ModuleList as 1x1-conv layers that
    return (new_x, org=input), matching the (x, org) contract of the original.
    """
    B, C, H, W = x.shape
    HW = H * W
    BHW = B * HW
    L = len(layer_weights)
    C4 = C // 4
    wi1, bi1, wi2, bi2, wh1, bh1, wh2, bh2 = lstm_params
    f32 = jnp.float32

    # ---- one-time layout & weight prep (XLA glue, outside the kernel) ------
    x_t = jnp.transpose(x, (1, 0, 2, 3)).reshape(C, BHW).astype(f32)      # (C, BHW)
    wt_all = jnp.stack([w.T for w in layer_weights]).astype(f32)          # (L, C, C)
    pool = jnp.repeat(jnp.eye(B, dtype=f32), HW, axis=0) / float(HW)      # (BHW, B)
    expand = jnp.repeat(jnp.eye(B, dtype=f32), HW, axis=1)                # (B, BHW)
    zpad = jnp.zeros((C4, C), f32)
    w1 = jnp.concatenate(
        [jnp.concatenate([wi1.T.astype(f32), zpad], axis=1),
         jnp.concatenate([zpad, wh1.T.astype(f32)], axis=1)], axis=0)     # (2*C4, 2C)
    b1 = jnp.concatenate([bi1.reshape(C4, 1), bh1.reshape(C4, 1)],
                         axis=0).astype(f32)                              # (2*C4, 1)
    w2 = jnp.concatenate([wi2.T, wh2.T], axis=1).astype(f32)              # (4C, 2*C4)
    b2 = (bi2 + bh2).reshape(4 * C, 1).astype(f32)                        # (4C, 1)

    def _spec(shape):
        return pl.BlockSpec(shape, lambda i: (0,) * len(shape))

    out_t = pl.pallas_call(
        functools.partial(_fused_attention_kernel, conv_in_dtype=conv_in_dtype),
        out_shape=jax.ShapeDtypeStruct((C, BHW), f32),
        grid_spec=pltpu.PrefetchScalarGridSpec(
            num_scalar_prefetch=0,
            grid=(1,),
            in_specs=[
                _spec((C, BHW)),         # x (lane-dense slab)
                _spec((L, C, C)),        # all per-layer conv W^T, VMEM-resident
                _spec((BHW, B)),         # pooling matrix (1/HW folded in)
                _spec((B, BHW)),         # expansion matrix
                _spec((2 * C4, 2 * C)),  # blockdiag(wi1^T, wh1^T)
                _spec((2 * C4, 1)),      # [bi1; bh1]
                _spec((4 * C, 2 * C4)),  # [wi2^T | wh2^T]
                _spec((4 * C, 1)),       # bi2 + bh2
            ],
            out_specs=_spec((C, BHW)),
        ),
        compiler_params=pltpu.CompilerParams(
            dimension_semantics=("arbitrary",)),
    )(x_t, wt_all, pool, expand, w1, b1, w2, b2)

    return out_t.reshape(C, B, H, W).transpose(1, 0, 2, 3)


def reference_forward(x, layer_weights, lstm_params):
    """Pure-JAX f32 reference mirroring the PyTorch semantics."""
    wi1, bi1, wi2, bi2, wh1, bh1, wh2, bh2 = lstm_params
    hi = lax.Precision.HIGHEST
    B, C = x.shape[0], x.shape[1]
    ht = jnp.zeros((B, C), jnp.float32)
    ct = jnp.zeros((B, C), jnp.float32)
    for w_layer in layer_weights:
        org = x
        x = jnp.einsum('bchw,cd->bdhw', x, w_layer, precision=hi)
        seq = jnp.mean(x, axis=(2, 3))
        g_i = jnp.matmul(jnp.maximum(jnp.matmul(seq, wi1, precision=hi) + bi1, 0.0),
                         wi2, precision=hi) + bi2
        g_h = jnp.matmul(jnp.maximum(jnp.matmul(ht, wh1, precision=hi) + bh1, 0.0),
                         wh2, precision=hi) + bh2
        g = g_i + g_h
        i_g = jax.nn.sigmoid(g[:, :C])
        f_g = jax.nn.sigmoid(g[:, C:2 * C])
        c_g = jnp.tanh(g[:, 2 * C:3 * C])
        o_g = jax.nn.sigmoid(g[:, 3 * C:])
        ct = f_g * ct + i_g * c_g
        ht = o_g * jax.nn.sigmoid(ct)   # faithful to PyTorch source (sigmoid, not tanh)
        x = jnp.maximum(x * ht[:, :, None, None] + org, 0.0)
    return x


def make_params(key, C, n_module_layers):
    """Deterministic synthetic parameters (no checkpoint loading)."""
    ks = jax.random.split(key, 16)
    s = 0.1
    C4 = C // 4
    lstm_params = (
        jax.random.normal(ks[0], (C, C4), jnp.float32) * s,        # w_ih linear1 (in, out)
        jax.random.normal(ks[1], (1, C4), jnp.float32) * s,        # b_ih linear1
        jax.random.normal(ks[2], (C4, 4 * C), jnp.float32) * s,    # w_ih linear2
        jax.random.normal(ks[3], (1, 4 * C), jnp.float32) * s,     # b_ih linear2
        jax.random.normal(ks[4], (C, C4), jnp.float32) * s,        # w_hh linear1
        jax.random.normal(ks[5], (1, C4), jnp.float32) * s,        # b_hh linear1
        jax.random.normal(ks[6], (C4, 4 * C), jnp.float32) * s,    # w_hh linear2
        jax.random.normal(ks[7], (1, 4 * C), jnp.float32) * s,     # b_hh linear2
    )
    layer_weights = [
        jax.random.normal(ks[8 + i], (C, C), jnp.float32) * (1.0 / C)
        + jnp.eye(C, dtype=jnp.float32)
        for i in range(n_module_layers)
    ]
    return layer_weights, lstm_params


if __name__ == "__main__":
    # block_idx = 1  ->  channels = 64, LSTMCell(64, 64, 1).
    # B=2, H=W=8  ->  B*H*W = 128  (lane-dense slab).
    B, C, H, W = 2, 64, 8, 8
    n_module_layers = 2   # exercises both the idx == 0 and idx > 0 branches

    key = jax.random.PRNGKey(0)
    k_x, k_p = jax.random.split(key)
    x = jax.random.normal(k_x, (B, C, H, W), jnp.float32)
    layer_weights, lstm_params = make_params(k_p, C, n_module_layers)

    ref = reference_forward(x, layer_weights, lstm_params)

    # Strict structural check: f32 conv inputs, tight tolerance.
    fwd_f32 = jax.jit(functools.partial(attention_forward,
                                        conv_in_dtype=jnp.float32))
    out_f32 = jax.block_until_ready(fwd_f32(x, layer_weights, lstm_params))
    assert out_f32.shape == (B, C, H, W)
    assert jnp.allclose(out_f32, ref, atol=1e-3, rtol=1e-3), \
        "f32 kernel mismatch vs JAX reference"

    # Fast path: bf16 inputs on the dominant conv matmul (f32 accumulate).
    # Tolerance reflects bf16 input rounding (~2^-9 relative) propagated
    # through two residual layers with |x| up to ~8; all other math is f32.
    fwd_bf16 = jax.jit(functools.partial(attention_forward,
                                         conv_in_dtype=jnp.bfloat16))
    out_bf16 = jax.block_until_ready(fwd_bf16(x, layer_weights, lstm_params))
    assert jnp.allclose(out_bf16, ref, atol=5e-2, rtol=2e-2), \
        "bf16-conv kernel mismatch vs JAX reference"

    print("KERNEL_OK")
</pallas_src>

<mosaic_0001>
module attributes {stable_mosaic.version = 11 : i64} {
  func.func @_fused_attention_kernel(%arg0: i32, %arg1: memref<64x128xf32, #tpu.memory_space<vmem>>, %arg2: memref<2x64x64xf32, #tpu.memory_space<vmem>>, %arg3: memref<128x2xf32, #tpu.memory_space<vmem>>, %arg4: memref<2x128xf32, #tpu.memory_space<vmem>>, %arg5: memref<32x128xf32, #tpu.memory_space<vmem>>, %arg6: memref<32x1xf32, #tpu.memory_space<vmem>>, %arg7: memref<256x32xf32, #tpu.memory_space<vmem>>, %arg8: memref<256x1xf32, #tpu.memory_space<vmem>>, %arg9: memref<64x128xf32, #tpu.memory_space<vmem>>) attributes {dimension_semantics = [#tpu.dimension_semantics<arbitrary>], iteration_bounds = array<i64: 1>, scalar_prefetch = 0 : i64, scratch_operands = 0 : i64, tpu.core_type = #tpu.core_type<tc>, window_params = [{pipeline_mode = #tpu.pipeline_mode<synchronous>, transform_indices = @transform_0, window_bounds = array<i64: 64, 128>}, {pipeline_mode = #tpu.pipeline_mode<synchronous>, transform_indices = @transform_1, window_bounds = array<i64: 2, 64, 64>}, {pipeline_mode = #tpu.pipeline_mode<synchronous>, transform_indices = @transform_2, window_bounds = array<i64: 128, 2>}, {pipeline_mode = #tpu.pipeline_mode<synchronous>, transform_indices = @transform_3, window_bounds = array<i64: 2, 128>}, {pipeline_mode = #tpu.pipeline_mode<synchronous>, transform_indices = @transform_4, window_bounds = array<i64: 32, 128>}, {pipeline_mode = #tpu.pipeline_mode<synchronous>, transform_indices = @transform_5, window_bounds = array<i64: 32, 1>}, {pipeline_mode = #tpu.pipeline_mode<synchronous>, transform_indices = @transform_6, window_bounds = array<i64: 256, 32>}, {pipeline_mode = #tpu.pipeline_mode<synchronous>, transform_indices = @transform_7, window_bounds = array<i64: 256, 1>}, {pipeline_mode = #tpu.pipeline_mode<synchronous>, transform_indices = @transform_8, window_bounds = array<i64: 64, 128>}]} {
    %c0 = arith.constant 0 : index
    %c0_0 = arith.constant 0 : index
    %0 = vector.load %arg1[%c0, %c0_0] : memref<64x128xf32, #tpu.memory_space<vmem>>, vector<64x128xf32>
    %c0_1 = arith.constant 0 : index
    %c0_2 = arith.constant 0 : index
    %1 = vector.load %arg3[%c0_1, %c0_2] : memref<128x2xf32, #tpu.memory_space<vmem>>, vector<128x2xf32>
    %c0_3 = arith.constant 0 : index
    %c0_4 = arith.constant 0 : index
    %2 = vector.load %arg4[%c0_3, %c0_4] : memref<2x128xf32, #tpu.memory_space<vmem>>, vector<2x128xf32>
    %c0_5 = arith.constant 0 : index
    %c0_6 = arith.constant 0 : index
    %3 = vector.load %arg5[%c0_5, %c0_6] : memref<32x128xf32, #tpu.memory_space<vmem>>, vector<32x128xf32>
    %c0_7 = arith.constant 0 : index
    %c0_8 = arith.constant 0 : index
    %4 = vector.load %arg6[%c0_7, %c0_8] : memref<32x1xf32, #tpu.memory_space<vmem>>, vector<32x1xf32>
    %c0_9 = arith.constant 0 : index
    %c0_10 = arith.constant 0 : index
    %5 = vector.load %arg7[%c0_9, %c0_10] : memref<256x32xf32, #tpu.memory_space<vmem>>, vector<256x32xf32>
    %c0_11 = arith.constant 0 : index
    %c0_12 = arith.constant 0 : index
    %6 = vector.load %arg8[%c0_11, %c0_12] : memref<256x1xf32, #tpu.memory_space<vmem>>, vector<256x1xf32>
    %cst = arith.constant 0.000000e+00 : f32
    %7 = vector.broadcast %cst : f32 to vector<64x2xf32>
    %cst_13 = arith.constant 0.000000e+00 : f32
    %8 = vector.broadcast %cst_13 : f32 to vector<64x2xf32>
    %c0_14 = arith.constant 0 : index
    %c0_15 = arith.constant 0 : index
    %c0_16 = arith.constant 0 : index
    %9 = vector.load %arg2[%c0_14, %c0_15, %c0_16] : memref<2x64x64xf32, #tpu.memory_space<vmem>>, vector<1x64x64xf32>
    %10 = vector.shape_cast %9 : vector<1x64x64xf32> to vector<64x64xf32>
    %cst_17 = arith.constant dense<0.000000e+00> : vector<64x128xf32>
    %11 = tpu.matmul %10, %0, %cst_17 {dimension_numbers = #tpu.dot_dimension_numbers<[1], [0], [0], [1], [0, 0, 1, 1], [], []>} : vector<64x64xf32>, vector<64x128xf32>, vector<64x128xf32> -> vector<64x128xf32>
    %cst_18 = arith.constant dense<0.000000e+00> : vector<64x2xf32>
    %12 = tpu.matmul %0, %1, %cst_18 {dimension_numbers = #tpu.dot_dimension_numbers<[1], [0], [0], [1], [0, 0, 1, 1], [], []>} : vector<64x128xf32>, vector<128x2xf32>, vector<64x2xf32> -> vector<64x2xf32>
    %cst_19 = arith.constant dense<0.000000e+00> : vector<64x2xf32>
    %13 = tpu.matmul %10, %12, %cst_19 {dimension_numbers = #tpu.dot_dimension_numbers<[1], [0], [0], [1], [0, 0, 1, 1], [], []>} : vector<64x64xf32>, vector<64x2xf32>, vector<64x2xf32> -> vector<64x2xf32>
    %14 = tpu.concatenate %13, %7 in 0 : vector<64x2xf32>, vector<64x2xf32> -> vector<128x2xf32>
    %cst_20 = arith.constant dense<0.000000e+00> : vector<32x2xf32>
    %15 = tpu.matmul %3, %14, %cst_20 {dimension_numbers = #tpu.dot_dimension_numbers<[1], [0], [0], [1], [0, 0, 1, 1], [], []>} : vector<32x128xf32>, vector<128x2xf32>, vector<32x2xf32> -> vector<32x2xf32>
    %16 = vector.broadcast %4 : vector<32x1xf32> to vector<32x2xf32>
    %17 = arith.addf %15, %16 : vector<32x2xf32>
    %cst_21 = arith.constant 0.000000e+00 : f32
    %18 = vector.broadcast %cst_21 : f32 to vector<32x2xf32>
    %19 = arith.maximumf %17, %18 : vector<32x2xf32>
    %cst_22 = arith.constant dense<0.000000e+00> : vector<256x2xf32>
    %20 = tpu.matmul %5, %19, %cst_22 {dimension_numbers = #tpu.dot_dimension_numbers<[1], [0], [0], [1], [0, 0, 1, 1], [], []>} : vector<256x32xf32>, vector<32x2xf32>, vector<256x2xf32> -> vector<256x2xf32>
    %21 = vector.broadcast %6 : vector<256x1xf32> to vector<256x2xf32>
    %22 = arith.addf %20, %21 : vector<256x2xf32>
    %23 = vector.extract_strided_slice %22 {offsets = [0, 0], sizes = [64, 2], strides = [1, 1]} : vector<256x2xf32> to vector<64x2xf32>
    %24 = arith.negf %23 : vector<64x2xf32>
    %25 = math.exp %24 : vector<64x2xf32>
    %cst_23 = arith.constant 1.000000e+00 : f32
    %26 = vector.broadcast %cst_23 : f32 to vector<64x2xf32>
    %27 = arith.addf %26, %25 : vector<64x2xf32>
    %28 = arith.divf %26, %27 : vector<64x2xf32>
    %29 = vector.extract_strided_slice %22 {offsets = [64, 0], sizes = [64, 2], strides = [1, 1]} : vector<256x2xf32> to vector<64x2xf32>
    %30 = arith.negf %29 : vector<64x2xf32>
    %31 = math.exp %30 : vector<64x2xf32>
    %cst_24 = arith.constant 1.000000e+00 : f32
    %32 = vector.broadcast %cst_24 : f32 to vector<64x2xf32>
    %33 = arith.addf %32, %31 : vector<64x2xf32>
    %34 = arith.divf %32, %33 : vector<64x2xf32>
    %35 = vector.extract_strided_slice %22 {offsets = [128, 0], sizes = [64, 2], strides = [1, 1]} : vector<256x2xf32> to vector<64x2xf32>
    %36 = math.tanh %35 : vector<64x2xf32>
    %37 = vector.extract_strided_slice %22 {offsets = [192, 0], sizes = [64, 2], strides = [1, 1]} : vector<256x2xf32> to vector<64x2xf32>
    %38 = arith.negf %37 : vector<64x2xf32>
    %39 = math.exp %38 : vector<64x2xf32>
    %cst_25 = arith.constant 1.000000e+00 : f32
    %40 = vector.broadcast %cst_25 : f32 to vector<64x2xf32>
    %41 = arith.addf %40, %39 : vector<64x2xf32>
    %42 = arith.divf %40, %41 : vector<64x2xf32>
    %43 = arith.mulf %34, %8 : vector<64x2xf32>
    %44 = arith.mulf %28, %36 : vector<64x2xf32>
    %45 = arith.addf %43, %44 : vector<64x2xf32>
    %46 = arith.negf %45 : vector<64x2xf32>
    %47 = math.exp %46 : vector<64x2xf32>
    %cst_26 = arith.constant 1.000000e+00 : f32
    %48 = vector.broadcast %cst_26 : f32 to vector<64x2xf32>
    %49 = arith.addf %48, %47 : vector<64x2xf32>
    %50 = arith.divf %48, %49 : vector<64x2xf32>
    %51 = arith.mulf %42, %50 : vector<64x2xf32>
    %cst_27 = arith.constant dense<0.000000e+00> : vector<64x128xf32>
    %52 = tpu.matmul %51, %2, %cst_27 {dimension_numbers = #tpu.dot_dimension_numbers<[1], [0], [0], [1], [0, 0, 1, 1], [], []>} : vector<64x2xf32>, vector<2x128xf32>, vector<64x128xf32> -> vector<64x128xf32>
    %53 = arith.mulf %11, %52 : vector<64x128xf32>
    %54 = arith.addf %53, %0 : vector<64x128xf32>
    %cst_28 = arith.constant 0.000000e+00 : f32
    %55 = vector.broadcast %cst_28 : f32 to vector<64x128xf32>
    %56 = arith.maximumf %54, %55 : vector<64x128xf32>
    %c1 = arith.constant 1 : index
    %c0_29 = arith.constant 0 : index
    %c0_30 = arith.constant 0 : index
    %57 = vector.load %arg2[%c1, %c0_29, %c0_30] : memref<2x64x64xf32, #tpu.memory_space<vmem>>, vector<1x64x64xf32>
    %58 = vector.shape_cast %57 : vector<1x64x64xf32> to vector<64x64xf32>
    %cst_31 = arith.constant dense<0.000000e+00> : vector<64x128xf32>
    %59 = tpu.matmul %58, %56, %cst_31 {dimension_numbers = #tpu.dot_dimension_numbers<[1], [0], [0], [1], [0, 0, 1, 1], [], []>} : vector<64x64xf32>, vector<64x128xf32>, vector<64x128xf32> -> vector<64x128xf32>
    %cst_32 = arith.constant dense<0.000000e+00> : vector<64x2xf32>
    %60 = tpu.matmul %56, %1, %cst_32 {dimension_numbers = #tpu.dot_dimension_numbers<[1], [0], [0], [1], [0, 0, 1, 1], [], []>} : vector<64x128xf32>, vector<128x2xf32>, vector<64x2xf32> -> vector<64x2xf32>
    %cst_33 = arith.constant dense<0.000000e+00> : vector<64x2xf32>
    %61 = tpu.matmul %58, %60, %cst_33 {dimension_numbers = #tpu.dot_dimension_numbers<[1], [0], [0], [1], [0, 0, 1, 1], [], []>} : vector<64x64xf32>, vector<64x2xf32>, vector<64x2xf32> -> vector<64x2xf32>
    %62 = tpu.concatenate %61, %51 in 0 : vector<64x2xf32>, vector<64x2xf32> -> vector<128x2xf32>
    %cst_34 = arith.constant dense<0.000000e+00> : vector<32x2xf32>
    %63 = tpu.matmul %3, %62, %cst_34 {dimension_numbers = #tpu.dot_dimension_numbers<[1], [0], [0], [1], [0, 0, 1, 1], [], []>} : vector<32x128xf32>, vector<128x2xf32>, vector<32x2xf32> -> vector<32x2xf32>
    %64 = vector.broadcast %4 : vector<32x1xf32> to vector<32x2xf32>
    %65 = arith.addf %63, %64 : vector<32x2xf32>
    %cst_35 = arith.constant 0.000000e+00 : f32
    %66 = vector.broadcast %cst_35 : f32 to vector<32x2xf32>
    %67 = arith.maximumf %65, %66 : vector<32x2xf32>
    %cst_36 = arith.constant dense<0.000000e+00> : vector<256x2xf32>
    %68 = tpu.matmul %5, %67, %cst_36 {dimension_numbers = #tpu.dot_dimension_numbers<[1], [0], [0], [1], [0, 0, 1, 1], [], []>} : vector<256x32xf32>, vector<32x2xf32>, vector<256x2xf32> -> vector<256x2xf32>
    %69 = vector.broadcast %6 : vector<256x1xf32> to vector<256x2xf32>
    %70 = arith.addf %68, %69 : vector<256x2xf32>
    %71 = vector.extract_strided_slice %70 {offsets = [0, 0], sizes = [64, 2], strides = [1, 1]} : vector<256x2xf32> to vector<64x2xf32>
    %72 = arith.negf %71 : vector<64x2xf32>
    %73 = math.exp %72 : vector<64x2xf32>
    %cst_37 = arith.constant 1.000000e+00 : f32
    %74 = vector.broadcast %cst_37 : f32 to vector<64x2xf32>
    %75 = arith.addf %74, %73 : vector<64x2xf32>
    %76 = arith.divf %74, %75 : vector<64x2xf32>
    %77 = vector.extract_strided_slice %70 {offsets = [64, 0], sizes = [64, 2], strides = [1, 1]} : vector<256x2xf32> to vector<64x2xf32>
    %78 = arith.negf %77 : vector<64x2xf32>
    %79 = math.exp %78 : vector<64x2xf32>
    %cst_38 = arith.constant 1.000000e+00 : f32
    %80 = vector.broadcast %cst_38 : f32 to vector<64x2xf32>
    %81 = arith.addf %80, %79 : vector<64x2xf32>
    %82 = arith.divf %80, %81 : vector<64x2xf32>
    %83 = vector.extract_strided_slice %70 {offsets = [128, 0], sizes = [64, 2], strides = [1, 1]} : vector<256x2xf32> to vector<64x2xf32>
    %84 = math.tanh %83 : vector<64x2xf32>
    %85 = vector.extract_strided_slice %70 {offsets = [192, 0], sizes = [64, 2], strides = [1, 1]} : vector<256x2xf32> to vector<64x2xf32>
    %86 = arith.negf %85 : vector<64x2xf32>
    %87 = math.exp %86 : vector<64x2xf32>
    %cst_39 = arith.constant 1.000000e+00 : f32
    %88 = vector.broadcast %cst_39 : f32 to vector<64x2xf32>
    %89 = arith.addf %88, %87 : vector<64x2xf32>
    %90 = arith.divf %88, %89 : vector<64x2xf32>
    %91 = arith.mulf %82, %45 : vector<64x2xf32>
    %92 = arith.mulf %76, %84 : vector<64x2xf32>
    %93 = arith.addf %91, %92 : vector<64x2xf32>
    %94 = arith.negf %93 : vector<64x2xf32>
    %95 = math.exp %94 : vector<64x2xf32>
    %cst_40 = arith.constant 1.000000e+00 : f32
    %96 = vector.broadcast %cst_40 : f32 to vector<64x2xf32>
    %97 = arith.addf %96, %95 : vector<64x2xf32>
    %98 = arith.divf %96, %97 : vector<64x2xf32>
    %99 = arith.mulf %90, %98 : vector<64x2xf32>
    %cst_41 = arith.constant dense<0.000000e+00> : vector<64x128xf32>
    %100 = tpu.matmul %99, %2, %cst_41 {dimension_numbers = #tpu.dot_dimension_numbers<[1], [0], [0], [1], [0, 0, 1, 1], [], []>} : vector<64x2xf32>, vector<2x128xf32>, vector<64x128xf32> -> vector<64x128xf32>
    %101 = arith.mulf %59, %100 : vector<64x128xf32>
    %102 = arith.addf %101, %56 : vector<64x128xf32>
    %cst_42 = arith.constant 0.000000e+00 : f32
    %103 = vector.broadcast %cst_42 : f32 to vector<64x128xf32>
    %104 = arith.maximumf %102, %103 : vector<64x128xf32>
    %c0_43 = arith.constant 0 : index
    %c0_44 = arith.constant 0 : index
    %105 = vector.load %arg9[%c0_43, %c0_44] : memref<64x128xf32, #tpu.memory_space<vmem>>, vector<64x128xf32>
    tpu.vector_store %arg9[%c0_43, %c0_44], %104 {strides = array<i32>} : memref<64x128xf32, #tpu.memory_space<vmem>>, vector<64x128xf32>,
    return
  }
  func.func @transform_0(%arg0: i32) -> (i32, i32) {
    %c0_i32 = arith.constant 0 : i32
    %c0_i32_0 = arith.constant 0 : i32
    %c0_i32_1 = arith.constant 0 : i32
    return %c0_i32, %c0_i32_0 : i32, i32
  }
  func.func @transform_1(%arg0: i32) -> (i32, i32, i32) {
    %c0_i32 = arith.constant 0 : i32
    %c0_i32_0 = arith.constant 0 : i32
    %c0_i32_1 = arith.constant 0 : i32
    %c0_i32_2 = arith.constant 0 : i32
    return %c0_i32, %c0_i32_0, %c0_i32_1 : i32, i32, i32
  }
  func.func @transform_2(%arg0: i32) -> (i32, i32) {
    %c0_i32 = arith.constant 0 : i32
    %c0_i32_0 = arith.constant 0 : i32
    %c0_i32_1 = arith.constant 0 : i32
    return %c0_i32, %c0_i32_0 : i32, i32
  }
  func.func @transform_3(%arg0: i32) -> (i32, i32) {
    %c0_i32 = arith.constant 0 : i32
    %c0_i32_0 = arith.constant 0 : i32
    %c0_i32_1 = arith.constant 0 : i32
    return %c0_i32, %c0_i32_0 : i32, i32
  }
  func.func @transform_4(%arg0: i32) -> (i32, i32) {
    %c0_i32 = arith.constant 0 : i32
    %c0_i32_0 = arith.constant 0 : i32
    %c0_i32_1 = arith.constant 0 : i32
    return %c0_i32, %c0_i32_0 : i32, i32
  }
  func.func @transform_5(%arg0: i32) -> (i32, i32) {
    %c0_i32 = arith.constant 0 : i32
    %c0_i32_0 = arith.constant 0 : i32
    %c0_i32_1 = arith.constant 0 : i32
    return %c0_i32, %c0_i32_0 : i32, i32
  }
  func.func @transform_6(%arg0: i32) -> (i32, i32) {
    %c0_i32 = arith.constant 0 : i32
    %c0_i32_0 = arith.constant 0 : i32
    %c0_i32_1 = arith.constant 0 : i32
    return %c0_i32, %c0_i32_0 : i32, i32
  }
  func.func @transform_7(%arg0: i32) -> (i32, i32) {
    %c0_i32 = arith.constant 0 : i32
    %c0_i32_0 = arith.constant 0 : i32
    %c0_i32_1 = arith.constant 0 : i32
    return %c0_i32, %c0_i32_0 : i32, i32
  }
  func.func @transform_8(%arg0: i32) -> (i32, i32) {
    %c0_i32 = arith.constant 0 : i32
    %c0_i32_0 = arith.constant 0 : i32
    %c0_i32_1 = arith.constant 0 : i32
    return %c0_i32, %c0_i32_0 : i32, i32
  }
}

</mosaic_0001>

<llo_original>
// kernel: attention_forward.1
$region0: #{attention_forward.1}
  #allocation0 [shape = 'u32[]', space=smem, size = 0x4, offset = 0x4, fixed_abs, tag = 'smem constant byte address 0x4 - core index']
  #allocation1 [shape = 'u32[72,128]{1,0:T(1,128)}', space=vmem, size = 0x9000, scoped, tag = 'internal scratch']
  %s0 = inlined_call_operand.vmem [shape: f32[64,128], index: 0, kind: input, shape index: {}]
  %s1 = inlined_call_operand.vmem [shape: f32[2,64,64], index: 1, kind: input, shape index: {}]
  %s2 = inlined_call_operand.vmem [shape: f32[128,2], index: 2, kind: input, shape index: {}]
  %s3 = inlined_call_operand.vmem [shape: f32[2,128], index: 3, kind: input, shape index: {}]
  %s4 = inlined_call_operand.vmem [shape: f32[32,128], index: 4, kind: input, shape index: {}]
  %s5 = inlined_call_operand.vmem [shape: f32[32,1], index: 5, kind: input, shape index: {}]
  %s6 = inlined_call_operand.vmem [shape: f32[256,32], index: 6, kind: input, shape index: {}]
  %s7 = inlined_call_operand.vmem [shape: f32[256,1], index: 7, kind: input, shape index: {}]
  %s8 = inlined_call_operand.vmem [shape: f32[64,128], index: 8, kind: output, shape index: {}]
  %s9 = sld [smem:[#allocation0]]
  $region42: #{attention_forward.1} parent=0
    _
  %s11 = ssub.s32 1, %s9
  %s12 = scalar_select 0, %s11, %s9
  // Predicated region
  $region2: #{attention_forward.1} parent=0 // pred_check
    _
  $region3: #{attention_forward.1} parent=0 // pred_check_branch
    %14 = sbr.rel (0) target = $region5
  $region4: #{attention_forward.1} parent=0 // pred_region
    _
  $region5: #{attention_forward.1} parent=0 // pred_fallthru
    _
  // Predicated region
  $region6: #{attention_forward.1} parent=0 // pred_check
    _
  $region7: #{attention_forward.1} parent=0 // pred_check_branch
    %16 = sbr.rel (0) target = $region9
  $region8: #{attention_forward.1} parent=0 // pred_region
    _
  $region9: #{attention_forward.1} parent=0 // pred_fallthru
    _
  // Predicated region
  $region10: #{attention_forward.1} parent=0 // pred_check
    _
  $region11: #{attention_forward.1} parent=0 // pred_check_branch
    %18 = sbr.rel (0) target = $region13
  $region12: #{attention_forward.1} parent=0 // pred_region
    _
  $region13: #{attention_forward.1} parent=0 // pred_fallthru
    _
  // Predicated region
  $region14: #{attention_forward.1} parent=0 // pred_check
    _
  $region15: #{attention_forward.1} parent=0 // pred_check_branch
    %20 = sbr.rel (0) target = $region17
  $region16: #{attention_forward.1} parent=0 // pred_region
    _
  $region17: #{attention_forward.1} parent=0 // pred_fallthru
    _
  // Predicated region
  $region18: #{attention_forward.1} parent=0 // pred_check
    _
  $region19: #{attention_forward.1} parent=0 // pred_check_branch
    %22 = sbr.rel (0) target = $region21
  $region20: #{attention_forward.1} parent=0 // pred_region
    _
  $region21: #{attention_forward.1} parent=0 // pred_fallthru
    _
  // Predicated region
  $region22: #{attention_forward.1} parent=0 // pred_check
    _
  $region23: #{attention_forward.1} parent=0 // pred_check_branch
    %24 = sbr.rel (0) target = $region25
  $region24: #{attention_forward.1} parent=0 // pred_region
    _
  $region25: #{attention_forward.1} parent=0 // pred_fallthru
    _
  // Predicated region
  $region26: #{attention_forward.1} parent=0 // pred_check
    _
  $region27: #{attention_forward.1} parent=0 // pred_check_branch
    %26 = sbr.rel (0) target = $region29
  $region28: #{attention_forward.1} parent=0 // pred_region
    _
  $region29: #{attention_forward.1} parent=0 // pred_fallthru
    _
  // Predicated region
  $region30: #{attention_forward.1} parent=0 // pred_check
    _
  $region31: #{attention_forward.1} parent=0 // pred_check_branch
    %28 = sbr.rel (0) target = $region33
  $region32: #{attention_forward.1} parent=0 // pred_region
    _
  $region33: #{attention_forward.1} parent=0 // pred_fallthru
    _
  %v29 = vld [vmem:[%s0] sm:$0xff]
  %v30 = vld [vmem:[%s0 + $0x8] sm:$0xff]
  %v31 = vld [vmem:[%s0 + $0x10] sm:$0xff]
  %v32 = vld [vmem:[%s0 + $0x18] sm:$0xff]
  %v33 = vld [vmem:[%s0 + $0x20] sm:$0xff]
  %v34 = vld [vmem:[%s0 + $0x28] sm:$0xff]
  %v35 = vld [vmem:[%s0 + $0x30] sm:$0xff]
  %v36 = vld [vmem:[%s0 + $0x38] sm:$0xff]
  %v37 = vld [vmem:[%s2] sm:$0xff]
  %v38 = vld [vmem:[%s2 + $0x8] sm:$0xff]
  %v39 = vld [vmem:[%s2 + $0x10] sm:$0xff]
  %v40 = vld [vmem:[%s2 + $0x18] sm:$0xff]
  %v41 = vld [vmem:[%s2 + $0x20] sm:$0xff]
  %v42 = vld [vmem:[%s2 + $0x28] sm:$0xff]
  %v43 = vld [vmem:[%s2 + $0x30] sm:$0xff]
  %v44 = vld [vmem:[%s2 + $0x38] sm:$0xff]
  %v45 = vld [vmem:[%s2 + $0x40] sm:$0xff]
  %v46 = vld [vmem:[%s2 + $0x48] sm:$0xff]
  %v47 = vld [vmem:[%s2 + $0x50] sm:$0xff]
  %v48 = vld [vmem:[%s2 + $0x58] sm:$0xff]
  %v49 = vld [vmem:[%s2 + $0x60] sm:$0xff]
  %v50 = vld [vmem:[%s2 + $0x68] sm:$0xff]
  %v51 = vld [vmem:[%s2 + $0x70] sm:$0xff]
  %v52 = vld [vmem:[%s2 + $0x78] sm:$0xff]
  %v53 = vld [vmem:[%s3] sm:$0x3]
  %v54 = vld [vmem:[%s4] sm:$0xff]
  %v55 = vld [vmem:[%s4 + $0x8] sm:$0xff]
  %v56 = vld [vmem:[%s4 + $0x10] sm:$0xff]
  %v57 = vld [vmem:[%s4 + $0x18] sm:$0xff]
  %v58 = vld [vmem:[%s5] sm:$0xff]
  %v59 = vld [vmem:[%s5 + $0x8] sm:$0xff]
  %v60 = vld [vmem:[%s5 + $0x10] sm:$0xff]
  %v61 = vld [vmem:[%s5 + $0x18] sm:$0xff]
  %v62 = vld [vmem:[%s6] sm:$0xff]
  %v63 = vld [vmem:[%s6 + $0x8] sm:$0xff]
  %v64 = vld [vmem:[%s6 + $0x10] sm:$0xff]
  %v65 = vld [vmem:[%s6 + $0x18] sm:$0xff]
  %v66 = vld [vmem:[%s6 + $0x20] sm:$0xff]
  %v67 = vld [vmem:[%s6 + $0x28] sm:$0xff]
  %v68 = vld [vmem:[%s6 + $0x30] sm:$0xff]
  %v69 = vld [vmem:[%s6 + $0x38] sm:$0xff]
  %v70 = vld [vmem:[%s6 + $0x40] sm:$0xff]
  %v71 = vld [vmem:[%s6 + $0x48] sm:$0xff]
  %v72 = vld [vmem:[%s6 + $0x50] sm:$0xff]
  %v73 = vld [vmem:[%s6 + $0x58] sm:$0xff]
  %v74 = vld [vmem:[%s6 + $0x60] sm:$0xff]
  %v75 = vld [vmem:[%s6 + $0x68] sm:$0xff]
  %v76 = vld [vmem:[%s6 + $0x70] sm:$0xff]
  %v77 = vld [vmem:[%s6 + $0x78] sm:$0xff]
  %v78 = vld [vmem:[%s6 + $0x80] sm:$0xff]
  %v79 = vld [vmem:[%s6 + $0x88] sm:$0xff]
  %v80 = vld [vmem:[%s6 + $0x90] sm:$0xff]
  %v81 = vld [vmem:[%s6 + $0x98] sm:$0xff]
  %v82 = vld [vmem:[%s6 + $0xa0] sm:$0xff]
  %v83 = vld [vmem:[%s6 + $0xa8] sm:$0xff]
  %v84 = vld [vmem:[%s6 + $0xb0] sm:$0xff]
  %v85 = vld [vmem:[%s6 + $0xb8] sm:$0xff]
  %v86 = vld [vmem:[%s6 + $0xc0] sm:$0xff]
  %v87 = vld [vmem:[%s6 + $0xc8] sm:$0xff]
  %v88 = vld [vmem:[%s6 + $0xd0] sm:$0xff]
  %v89 = vld [vmem:[%s6 + $0xd8] sm:$0xff]
  %v90 = vld [vmem:[%s6 + $0xe0] sm:$0xff]
  %v91 = vld [vmem:[%s6 + $0xe8] sm:$0xff]
  %v92 = vld [vmem:[%s6 + $0xf0] sm:$0xff]
  %v93 = vld [vmem:[%s6 + $0xf8] sm:$0xff]
  %v94 = vld [vmem:[%s7] sm:$0xff]
  %v95 = vld [vmem:[%s7 + $0x8] sm:$0xff]
  %v96 = vld [vmem:[%s7 + $0x10] sm:$0xff]
  %v97 = vld [vmem:[%s7 + $0x18] sm:$0xff]
  %v98 = vld [vmem:[%s7 + $0x20] sm:$0xff]
  %v99 = vld [vmem:[%s7 + $0x28] sm:$0xff]
  %v100 = vld [vmem:[%s7 + $0x30] sm:$0xff]
  %v101 = vld [vmem:[%s7 + $0x38] sm:$0xff]
  %v102 = vld [vmem:[%s7 + $0x40] sm:$0xff]
  %v103 = vld [vmem:[%s7 + $0x48] sm:$0xff]
  %v104 = vld [vmem:[%s7 + $0x50] sm:$0xff]
  %v105 = vld [vmem:[%s7 + $0x58] sm:$0xff]
  %v106 = vld [vmem:[%s7 + $0x60] sm:$0xff]
  %v107 = vld [vmem:[%s7 + $0x68] sm:$0xff]
  %v108 = vld [vmem:[%s7 + $0x70] sm:$0xff]
  %v109 = vld [vmem:[%s7 + $0x78] sm:$0xff]
  %v110 = vld [vmem:[%s7 + $0x80] sm:$0xff]
  %v111 = vld [vmem:[%s7 + $0x88] sm:$0xff]
  %v112 = vld [vmem:[%s7 + $0x90] sm:$0xff]
  %v113 = vld [vmem:[%s7 + $0x98] sm:$0xff]
  %v114 = vld [vmem:[%s7 + $0xa0] sm:$0xff]
  %v115 = vld [vmem:[%s7 + $0xa8] sm:$0xff]
  %v116 = vld [vmem:[%s7 + $0xb0] sm:$0xff]
  %v117 = vld [vmem:[%s7 + $0xb8] sm:$0xff]
  %v118 = vld [vmem:[%s7 + $0xc0] sm:$0xff]
  %v119 = vld [vmem:[%s7 + $0xc8] sm:$0xff]
  %v120 = vld [vmem:[%s7 + $0xd0] sm:$0xff]
  %v121 = vld [vmem:[%s7 + $0xd8] sm:$0xff]
  %v122 = vld [vmem:[%s7 + $0xe0] sm:$0xff]
  %v123 = vld [vmem:[%s7 + $0xe8] sm:$0xff]
  %v124 = vld [vmem:[%s7 + $0xf0] sm:$0xff]
  %v125 = vld [vmem:[%s7 + $0xf8] sm:$0xff]
  %v126 = vld [vmem:[%s1] sm:$0xff]
  %v127 = vld [vmem:[%s1 + $0x8] sm:$0xff]
  %v128 = vld [vmem:[%s1 + $0x10] sm:$0xff]
  %v129 = vld [vmem:[%s1 + $0x18] sm:$0xff]
  %v130 = vld [vmem:[%s1 + $0x20] sm:$0xff]
  %v131 = vld [vmem:[%s1 + $0x28] sm:$0xff]
  %v132 = vld [vmem:[%s1 + $0x30] sm:$0xff]
  %v133 = vld [vmem:[%s1 + $0x38] sm:$0xff]
  %vm134 = vcmask 523264
  %v136 = vsel %vm134, %v126, 0
  %v139 = vsel %vm134, %v127, 0
  %v142 = vsel %vm134, %v128, 0
  %v145 = vsel %vm134, %v129, 0
  %v148 = vsel %vm134, %v130, 0
  %v151 = vsel %vm134, %v131, 0
  %v154 = vsel %vm134, %v132, 0
  %v157 = vsel %vm134, %v133, 0
  %159 = vmatpush.msra.mxu0 0.0
  %160 = vmatpush.msra.mxu0 0.0
  %161 = vmatpush.msra.mxu0 0.0
  %162 = vmatpush.msra.mxu0 0.0
  %163 = vmatpush.msra.mxu0 0.0
  %164 = vmatpush.msra.mxu0 0.0
  %165 = vmatpush.msra.mxu0 0.0
  %166 = vmatpush.msra.mxu0 0.0
  %167 = vmatpush.msra.mxu0 %v36
  %168 = vmatpush.msra.mxu0 %v35
  %169 = vmatpush.msra.mxu0 %v34
  %170 = vmatpush.msra.mxu0 %v33
  %171 = vmatpush.msra.mxu0 %v32
  %172 = vmatpush.msra.mxu0 %v31
  %173 = vmatpush.msra.mxu0 %v30
  %174 = vmatpush.msra.mxu0 %v29
  %175 = vmatmul.f32.gmra.mxu0 %v136
  %v176 = vpop.f32.mrf.mxu0
  %v177 = vadd.f32 0.0, %v176
  %178 = vmatmul.f32.gmra.mxu0 %v139
  %v179 = vpop.f32.mrf.mxu0
  %v180 = vadd.f32 0.0, %v179
  %181 = vmatmul.f32.gmra.mxu0 %v142
  %v182 = vpop.f32.mrf.mxu0
  %v183 = vadd.f32 0.0, %v182
  %184 = vmatmul.f32.gmra.mxu0 %v145
  %v185 = vpop.f32.mrf.mxu0
  %v186 = vadd.f32 0.0, %v185
  %187 = vmatmul.f32.gmra.mxu0 %v148
  %v188 = vpop.f32.mrf.mxu0
  %v189 = vadd.f32 0.0, %v188
  %190 = vmatmul.f32.gmra.mxu0 %v151
  %v191 = vpop.f32.mrf.mxu0
  %v192 = vadd.f32 0.0, %v191
  %193 = vmatmul.f32.gmra.mxu0 %v154
  %v194 = vpop.f32.mrf.mxu0
  %v195 = vadd.f32 0.0, %v194
  %196 = vmatmul.f32.gmra.mxu0 %v157
  %v197 = vpop.f32.mrf.mxu0
  %v198 = vadd.f32 0.0, %v197
  %199 = vdwg.mxu0
  %200 = vmatpush.msra.mxu0 %v52
  %201 = vmatpush.msra.mxu0 %v51
  %202 = vmatpush.msra.mxu0 %v50
  %203 = vmatpush.msra.mxu0 %v49
  %204 = vmatpush.msra.mxu0 %v48
  %205 = vmatpush.msra.mxu0 %v47
  %206 = vmatpush.msra.mxu0 %v46
  %207 = vmatpush.msra.mxu0 %v45
  %208 = vmatpush.msra.mxu0 %v44
  %209 = vmatpush.msra.mxu0 %v43
  %210 = vmatpush.msra.mxu0 %v42
  %211 = vmatpush.msra.mxu0 %v41
  %212 = vmatpush.msra.mxu0 %v40
  %213 = vmatpush.msra.mxu0 %v39
  %214 = vmatpush.msra.mxu0 %v38
  %215 = vmatpush.msra.mxu0 %v37
  %216 = vmatmul.f32.gmra.mxu0 %v29
  %v217 = vpop.f32.mrf.mxu0
  %v218 = vadd.f32 0.0, %v217
  %219 = vmatmul.f32.gmra.mxu0 %v30
  %v220 = vpop.f32.mrf.mxu0
  %v221 = vadd.f32 0.0, %v220
  %222 = vmatmul.f32.gmra.mxu0 %v31
  %v223 = vpop.f32.mrf.mxu0
  %v224 = vadd.f32 0.0, %v223
  %225 = vmatmul.f32.gmra.mxu0 %v32
  %v226 = vpop.f32.mrf.mxu0
  %v227 = vadd.f32 0.0, %v226
  %228 = vmatmul.f32.gmra.mxu0 %v33
  %v229 = vpop.f32.mrf.mxu0
  %v230 = vadd.f32 0.0, %v229
  %231 = vmatmul.f32.gmra.mxu0 %v34
  %v232 = vpop.f32.mrf.mxu0
  %v233 = vadd.f32 0.0, %v232
  %234 = vmatmul.f32.gmra.mxu0 %v35
  %v235 = vpop.f32.mrf.mxu0
  %v236 = vadd.f32 0.0, %v235
  %237 = vmatmul.f32.gmra.mxu0 %v36
  %v238 = vpop.f32.mrf.mxu0
  %v239 = vadd.f32 0.0, %v238
  %240 = vdwg.mxu0
  %241 = vmatpush.msra.mxu0 0.0
  %242 = vmatpush.msra.mxu0 0.0
  %243 = vmatpush.msra.mxu0 0.0
  %244 = vmatpush.msra.mxu0 0.0
  %245 = vmatpush.msra.mxu0 0.0
  %246 = vmatpush.msra.mxu0 0.0
  %247 = vmatpush.msra.mxu0 0.0
  %248 = vmatpush.msra.mxu0 0.0
  %249 = vmatpush.msra.mxu0 %v239
  %250 = vmatpush.msra.mxu0 %v236
  %251 = vmatpush.msra.mxu0 %v233
  %252 = vmatpush.msra.mxu0 %v230
  %253 = vmatpush.msra.mxu0 %v227
  %254 = vmatpush.msra.mxu0 %v224
  %255 = vmatpush.msra.mxu0 %v221
  %256 = vmatpush.msra.mxu0 %v218
  %257 = vmatmul.f32.gmra.mxu0 %v136
  %v258 = vpop.f32.mrf.mxu0
  %v259 = vadd.f32 0.0, %v258
  %260 = vmatmul.f32.gmra.mxu0 %v139
  %v261 = vpop.f32.mrf.mxu0
  %v262 = vadd.f32 0.0, %v261
  %263 = vmatmul.f32.gmra.mxu0 %v142
  %v264 = vpop.f32.mrf.mxu0
  %v265 = vadd.f32 0.0, %v264
  %266 = vmatmul.f32.gmra.mxu0 %v145
  %v267 = vpop.f32.mrf.mxu0
  %v268 = vadd.f32 0.0, %v267
  %269 = vmatmul.f32.gmra.mxu0 %v148
  %v270 = vpop.f32.mrf.mxu0
  %v271 = vadd.f32 0.0, %v270
  %272 = vmatmul.f32.gmra.mxu0 %v151
  %v273 = vpop.f32.mrf.mxu0
  %v274 = vadd.f32 0.0, %v273
  %275 = vmatmul.f32.gmra.mxu0 %v154
  %v276 = vpop.f32.mrf.mxu0
  %v277 = vadd.f32 0.0, %v276
  %278 = vmatmul.f32.gmra.mxu0 %v157
  %v279 = vpop.f32.mrf.mxu0
  %v280 = vadd.f32 0.0, %v279
  %281 = vdwg.mxu0
  %283 = vset.pattern.permute.xlu0 0
  %284 = vperm.xlu0 %283, %v58
  %v285 = vpop.permute.xlu0 %284
  %288 = vset.pattern.permute.xlu0 0
  %289 = vperm.xlu0 %288, %v59
  %v290 = vpop.permute.xlu0 %289
  %293 = vset.pattern.permute.xlu0 0
  %294 = vperm.xlu0 %293, %v60
  %v295 = vpop.permute.xlu0 %294
  %298 = vset.pattern.permute.xlu0 0
  %299 = vperm.xlu0 %298, %v61
  %v300 = vpop.permute.xlu0 %299
  %302 = vmatpush.msra.mxu0 0.0
  %303 = vmatpush.msra.mxu0 0.0
  %304 = vmatpush.msra.mxu0 0.0
  %305 = vmatpush.msra.mxu0 0.0
  %306 = vmatpush.msra.mxu0 0.0
  %307 = vmatpush.msra.mxu0 0.0
  %308 = vmatpush.msra.mxu0 0.0
  %309 = vmatpush.msra.mxu0 0.0
  %310 = vmatpush.msra.mxu0 %v280
  %311 = vmatpush.msra.mxu0 %v277
  %312 = vmatpush.msra.mxu0 %v274
  %313 = vmatpush.msra.mxu0 %v271
  %314 = vmatpush.msra.mxu0 %v268
  %315 = vmatpush.msra.mxu0 %v265
  %316 = vmatpush.msra.mxu0 %v262
  %317 = vmatpush.msra.mxu0 %v259
  %318 = vmatmul.f32.gmra.mxu0 %v54
  %v319 = vpop.f32.mrf.mxu0
  %v320 = vadd.f32 %v285, %v319
  %321 = vmatmul.f32.gmra.mxu0 %v55
  %v322 = vpop.f32.mrf.mxu0
  %v323 = vadd.f32 %v290, %v322
  %324 = vmatmul.f32.gmra.mxu0 %v56
  %v325 = vpop.f32.mrf.mxu0
  %v326 = vadd.f32 %v295, %v325
  %327 = vmatmul.f32.gmra.mxu0 %v57
  %v328 = vpop.f32.mrf.mxu0
  %v329 = vadd.f32 %v300, %v328
  %330 = vdwg.mxu0
  %v331 = vmax.f32 %v320, 0.0
  %v332 = vmax.f32 %v323, 0.0
  %v333 = vmax.f32 %v326, 0.0
  %v334 = vmax.f32 %v329, 0.0
  %336 = vset.pattern.permute.xlu0 0
  %337 = vperm.xlu0 %336, %v94
  %v338 = vpop.permute.xlu0 %337
  %341 = vset.pattern.permute.xlu0 0
  %342 = vperm.xlu0 %341, %v95
  %v343 = vpop.permute.xlu0 %342
  %346 = vset.pattern.permute.xlu0 0
  %347 = vperm.xlu0 %346, %v96
  %v348 = vpop.permute.xlu0 %347
  %351 = vset.pattern.permute.xlu0 0
  %352 = vperm.xlu0 %351, %v97
  %v353 = vpop.permute.xlu0 %352
  %356 = vset.pattern.permute.xlu0 0
  %357 = vperm.xlu0 %356, %v98
  %v358 = vpop.permute.xlu0 %357
  %361 = vset.pattern.permute.xlu0 0
  %362 = vperm.xlu0 %361, %v99
  %v363 = vpop.permute.xlu0 %362
  %366 = vset.pattern.permute.xlu0 0
  %367 = vperm.xlu0 %366, %v100
  %v368 = vpop.permute.xlu0 %367
  %371 = vset.pattern.permute.xlu0 0
  %372 = vperm.xlu0 %371, %v101
  %v373 = vpop.permute.xlu0 %372
  %376 = vset.pattern.permute.xlu0 0
  %377 = vperm.xlu0 %376, %v102
  %v378 = vpop.permute.xlu0 %377
  %381 = vset.pattern.permute.xlu0 0
  %382 = vperm.xlu0 %381, %v103
  %v383 = vpop.permute.xlu0 %382
  %386 = vset.pattern.permute.xlu0 0
  %387 = vperm.xlu0 %386, %v104
  %v388 = vpop.permute.xlu0 %387
  %391 = vset.pattern.permute.xlu0 0
  %392 = vperm.xlu0 %391, %v105
  %v393 = vpop.permute.xlu0 %392
  %396 = vset.pattern.permute.xlu0 0
  %397 = vperm.xlu0 %396, %v106
  %v398 = vpop.permute.xlu0 %397
  %401 = vset.pattern.permute.xlu0 0
  %402 = vperm.xlu0 %401, %v107
  %v403 = vpop.permute.xlu0 %402
  %406 = vset.pattern.permute.xlu0 0
  %407 = vperm.xlu0 %406, %v108
  %v408 = vpop.permute.xlu0 %407
  %411 = vset.pattern.permute.xlu0 0
  %412 = vperm.xlu0 %411, %v109
  %v413 = vpop.permute.xlu0 %412
  %416 = vset.pattern.permute.xlu0 0
  %417 = vperm.xlu0 %416, %v110
  %v418 = vpop.permute.xlu0 %417
  %421 = vset.pattern.permute.xlu0 0
  %422 = vperm.xlu0 %421, %v111
  %v423 = vpop.permute.xlu0 %422
  %426 = vset.pattern.permute.xlu0 0
  %427 = vperm.xlu0 %426, %v112
  %v428 = vpop.permute.xlu0 %427
  %431 = vset.pattern.permute.xlu0 0
  %432 = vperm.xlu0 %431, %v113
  %v433 = vpop.permute.xlu0 %432
  %436 = vset.pattern.permute.xlu0 0
  %437 = vperm.xlu0 %436, %v114
  %v438 = vpop.permute.xlu0 %437
  %441 = vset.pattern.permute.xlu0 0
  %442 = vperm.xlu0 %441, %v115
  %v443 = vpop.permute.xlu0 %442
  %446 = vset.pattern.permute.xlu0 0
  %447 = vperm.xlu0 %446, %v116
  %v448 = vpop.permute.xlu0 %447
  %451 = vset.pattern.permute.xlu0 0
  %452 = vperm.xlu0 %451, %v117
  %v453 = vpop.permute.xlu0 %452
  %456 = vset.pattern.permute.xlu0 0
  %457 = vperm.xlu0 %456, %v118
  %v458 = vpop.permute.xlu0 %457
  %461 = vset.pattern.permute.xlu0 0
  %462 = vperm.xlu0 %461, %v119
  %v463 = vpop.permute.xlu0 %462
  %466 = vset.pattern.permute.xlu0 0
  %467 = vperm.xlu0 %466, %v120
  %v468 = vpop.permute.xlu0 %467
  %471 = vset.pattern.permute.xlu0 0
  %472 = vperm.xlu0 %471, %v121
  %v473 = vpop.permute.xlu0 %472
  %476 = vset.pattern.permute.xlu0 0
  %477 = vperm.xlu0 %476, %v122
  %v478 = vpop.permute.xlu0 %477
  %481 = vset.pattern.permute.xlu0 0
  %482 = vperm.xlu0 %481, %v123
  %v483 = vpop.permute.xlu0 %482
  %486 = vset.pattern.permute.xlu0 0
  %487 = vperm.xlu0 %486, %v124
  %v488 = vpop.permute.xlu0 %487
  %491 = vset.pattern.permute.xlu0 0
  %492 = vperm.xlu0 %491, %v125
  %v493 = vpop.permute.xlu0 %492
  %vm495 = vcmask 261120
  %v497 = vsel %vm495, %v62, 0
  %v500 = vsel %vm495, %v63, 0
  %v503 = vsel %vm495, %v64, 0
  %v506 = vsel %vm495, %v65, 0
  %v509 = vsel %vm495, %v66, 0
  %v512 = vsel %vm495, %v67, 0
  %v515 = vsel %vm495, %v68, 0
  %v518 = vsel %vm495, %v69, 0
  %v521 = vsel %vm495, %v70, 0
  %v524 = vsel %vm495, %v71, 0
  %v527 = vsel %vm495, %v72, 0
  %v530 = vsel %vm495, %v73, 0
  %v533 = vsel %vm495, %v74, 0
  %v536 = vsel %vm495, %v75, 0
  %v539 = vsel %vm495, %v76, 0
  %v542 = vsel %vm495, %v77, 0
  %v545 = vsel %vm495, %v78, 0
  %v548 = vsel %vm495, %v79, 0
  %v551 = vsel %vm495, %v80, 0
  %v554 = vsel %vm495, %v81, 0
  %v557 = vsel %vm495, %v82, 0
  %v560 = vsel %vm495, %v83, 0
  %v563 = vsel %vm495, %v84, 0
  %v566 = vsel %vm495, %v85, 0
  %v569 = vsel %vm495, %v86, 0
  %v572 = vsel %vm495, %v87, 0
  %v575 = vsel %vm495, %v88, 0
  %v578 = vsel %vm495, %v89, 0
  %v581 = vsel %vm495, %v90, 0
  %v584 = vsel %vm495, %v91, 0
  %v587 = vsel %vm495, %v92, 0
  %v590 = vsel %vm495, %v93, 0
  %592 = vmatpush.msra.mxu0 0.0
  %593 = vmatpush.msra.mxu0 0.0
  %594 = vmatpush.msra.mxu0 0.0
  %595 = vmatpush.msra.mxu0 0.0
  %596 = vmatpush.msra.mxu0 0.0
  %597 = vmatpush.msra.mxu0 0.0
  %598 = vmatpush.msra.mxu0 0.0
  %599 = vmatpush.msra.mxu0 0.0
  %600 = vmatpush.msra.mxu0 0.0
  %601 = vmatpush.msra.mxu0 0.0
  %602 = vmatpush.msra.mxu0 0.0
  %603 = vmatpush.msra.mxu0 0.0
  %604 = vmatpush.msra.mxu0 %v334
  %605 = vmatpush.msra.mxu0 %v333
  %606 = vmatpush.msra.mxu0 %v332
  %607 = vmatpush.msra.mxu0 %v331
  %608 = vmatmul.f32.gmra.mxu0 %v497
  %v609 = vpop.f32.mrf.mxu0
  %v610 = vadd.f32 %v338, %v609
  %611 = vmatmul.f32.gmra.mxu0 %v500
  %v612 = vpop.f32.mrf.mxu0
  %v613 = vadd.f32 %v343, %v612
  %614 = vmatmul.f32.gmra.mxu0 %v503
  %v615 = vpop.f32.mrf.mxu0
  %v616 = vadd.f32 %v348, %v615
  %617 = vmatmul.f32.gmra.mxu0 %v506
  %v618 = vpop.f32.mrf.mxu0
  %v619 = vadd.f32 %v353, %v618
  %620 = vmatmul.f32.gmra.mxu0 %v509
  %v621 = vpop.f32.mrf.mxu0
  %v622 = vadd.f32 %v358, %v621
  %623 = vmatmul.f32.gmra.mxu0 %v512
  %v624 = vpop.f32.mrf.mxu0
  %v625 = vadd.f32 %v363, %v624
  %626 = vmatmul.f32.gmra.mxu0 %v515
  %v627 = vpop.f32.mrf.mxu0
  %v628 = vadd.f32 %v368, %v627
  %629 = vmatmul.f32.gmra.mxu0 %v518
  %v630 = vpop.f32.mrf.mxu0
  %v631 = vadd.f32 %v373, %v630
  %632 = vmatmul.f32.gmra.mxu0 %v521
  %v633 = vpop.f32.mrf.mxu0
  %v634 = vadd.f32 %v378, %v633
  %635 = vmatmul.f32.gmra.mxu0 %v524
  %v636 = vpop.f32.mrf.mxu0
  %v637 = vadd.f32 %v383, %v636
  %638 = vmatmul.f32.gmra.mxu0 %v527
  %v639 = vpop.f32.mrf.mxu0
  %v640 = vadd.f32 %v388, %v639
  %641 = vmatmul.f32.gmra.mxu0 %v530
  %v642 = vpop.f32.mrf.mxu0
  %v643 = vadd.f32 %v393, %v642
  %644 = vmatmul.f32.gmra.mxu0 %v533
  %v645 = vpop.f32.mrf.mxu0
  %v646 = vadd.f32 %v398, %v645
  %647 = vmatmul.f32.gmra.mxu0 %v536
  %v648 = vpop.f32.mrf.mxu0
  %v649 = vadd.f32 %v403, %v648
  %650 = vmatmul.f32.gmra.mxu0 %v539
  %v651 = vpop.f32.mrf.mxu0
  %v652 = vadd.f32 %v408, %v651
  %653 = vmatmul.f32.gmra.mxu0 %v542
  %v654 = vpop.f32.mrf.mxu0
  %v655 = vadd.f32 %v413, %v654
  %656 = vmatmul.f32.gmra.mxu0 %v545
  %v657 = vpop.f32.mrf.mxu0
  %v658 = vadd.f32 %v418, %v657
  %659 = vmatmul.f32.gmra.mxu0 %v548
  %v660 = vpop.f32.mrf.mxu0
  %v661 = vadd.f32 %v423, %v660
  %662 = vmatmul.f32.gmra.mxu0 %v551
  %v663 = vpop.f32.mrf.mxu0
  %v664 = vadd.f32 %v428, %v663
  %665 = vmatmul.f32.gmra.mxu0 %v554
  %v666 = vpop.f32.mrf.mxu0
  %v667 = vadd.f32 %v433, %v666
  %668 = vmatmul.f32.gmra.mxu0 %v557
  %v669 = vpop.f32.mrf.mxu0
  %v670 = vadd.f32 %v438, %v669
  %671 = vmatmul.f32.gmra.mxu0 %v560
  %v672 = vpop.f32.mrf.mxu0
  %v673 = vadd.f32 %v443, %v672
  %674 = vmatmul.f32.gmra.mxu0 %v563
  %v675 = vpop.f32.mrf.mxu0
  %v676 = vadd.f32 %v448, %v675
  %677 = vmatmul.f32.gmra.mxu0 %v566
  %v678 = vpop.f32.mrf.mxu0
  %v679 = vadd.f32 %v453, %v678
  %680 = vmatmul.f32.gmra.mxu0 %v569
  %v681 = vpop.f32.mrf.mxu0
  %v682 = vadd.f32 %v458, %v681
  %683 = vmatmul.f32.gmra.mxu0 %v572
  %v684 = vpop.f32.mrf.mxu0
  %v685 = vadd.f32 %v463, %v684
  %686 = vmatmul.f32.gmra.mxu0 %v575
  %v687 = vpop.f32.mrf.mxu0
  %v688 = vadd.f32 %v468, %v687
  %689 = vmatmul.f32.gmra.mxu0 %v578
  %v690 = vpop.f32.mrf.mxu0
  %v691 = vadd.f32 %v473, %v690
  %692 = vmatmul.f32.gmra.mxu0 %v581
  %v693 = vpop.f32.mrf.mxu0
  %v694 = vadd.f32 %v478, %v693
  %695 = vmatmul.f32.gmra.mxu0 %v584
  %v696 = vpop.f32.mrf.mxu0
  %v697 = vadd.f32 %v483, %v696
  %698 = vmatmul.f32.gmra.mxu0 %v587
  %v699 = vpop.f32.mrf.mxu0
  %v700 = vadd.f32 %v488, %v699
  %701 = vmatmul.f32.gmra.mxu0 %v590
  %v702 = vpop.f32.mrf.mxu0
  %v703 = vadd.f32 %v493, %v702
  %704 = vdwg.mxu0
  %v705 = vxor.u32 %v610, 2147483648
  %v706 = vxor.u32 %v613, 2147483648
  %v707 = vxor.u32 %v616, 2147483648
  %v708 = vxor.u32 %v619, 2147483648
  %v709 = vxor.u32 %v622, 2147483648
  %v710 = vxor.u32 %v625, 2147483648
  %v711 = vxor.u32 %v628, 2147483648
  %v712 = vxor.u32 %v631, 2147483648
  %v713 = vmul.f32 %v705, 1.442695
  %v714 = vpow.pop %v713
  %v715 = vmul.f32 %v706, 1.442695
  %v716 = vpow.pop %v715
  %v717 = vmul.f32 %v707, 1.442695
  %v718 = vpow.pop %v717
  %v719 = vmul.f32 %v708, 1.442695
  %v720 = vpow.pop %v719
  %v721 = vmul.f32 %v709, 1.442695
  %v722 = vpow.pop %v721
  %v723 = vmul.f32 %v710, 1.442695
  %v724 = vpow.pop %v723
  %v725 = vmul.f32 %v711, 1.442695
  %v726 = vpow.pop %v725
  %v727 = vmul.f32 %v712, 1.442695
  %v728 = vpow.pop %v727
  %v729 = vadd.f32 %v714, 1.0
  %v730 = vadd.f32 %v716, 1.0
  %v731 = vadd.f32 %v718, 1.0
  %v732 = vadd.f32 %v720, 1.0
  %v733 = vadd.f32 %v722, 1.0
  %v734 = vadd.f32 %v724, 1.0
  %v735 = vadd.f32 %v726, 1.0
  %v736 = vadd.f32 %v728, 1.0
  %v737 = vrcp.pop %v729
  %v738 = vmul.f32 %v729, %v737
  %v739 = vsub.f32 1.0, %v738
  %v740 = vmul.f32 %v737, %v739
  %v741 = vadd.f32 %v737, %v740
  %vm742 = vweird.f32 %v729
  %vm743 = vweird.f32 %v737
  %vm744 = vmor %vm742, %vm743
  %v745 = vsel %vm744, %v737, %v741
  %v746 = vand.u32 2147483647, %v729
  %vm747 = vcmp.eq.f32.partialorder %v746, 8.507059e+37
  %v748 = vand.u32 %v729, 2147483648
  %v749 = vor.u32 1.1754944e-38, %v748
  %v750 = vsel %vm747, %v749, %v745
  %v751 = vmul.f32 1.0, %v750
  %v752 = vrcp.pop %v730
  %v753 = vmul.f32 %v730, %v752
  %v754 = vsub.f32 1.0, %v753
  %v755 = vmul.f32 %v752, %v754
  %v756 = vadd.f32 %v752, %v755
  %vm757 = vweird.f32 %v730
  %vm758 = vweird.f32 %v752
  %vm759 = vmor %vm757, %vm758
  %v760 = vsel %vm759, %v752, %v756
  %v761 = vand.u32 2147483647, %v730
  %vm762 = vcmp.eq.f32.partialorder %v761, 8.507059e+37
  %v763 = vand.u32 %v730, 2147483648
  %v764 = vor.u32 1.1754944e-38, %v763
  %v765 = vsel %vm762, %v764, %v760
  %v766 = vmul.f32 1.0, %v765
  %v767 = vrcp.pop %v731
  %v768 = vmul.f32 %v731, %v767
  %v769 = vsub.f32 1.0, %v768
  %v770 = vmul.f32 %v767, %v769
  %v771 = vadd.f32 %v767, %v770
  %vm772 = vweird.f32 %v731
  %vm773 = vweird.f32 %v767
  %vm774 = vmor %vm772, %vm773
  %v775 = vsel %vm774, %v767, %v771
  %v776 = vand.u32 2147483647, %v731
  %vm777 = vcmp.eq.f32.partialorder %v776, 8.507059e+37
  %v778 = vand.u32 %v731, 2147483648
  %v779 = vor.u32 1.1754944e-38, %v778
  %v780 = vsel %vm777, %v779, %v775
  %v781 = vmul.f32 1.0, %v780
  %v782 = vrcp.pop %v732
  %v783 = vmul.f32 %v732, %v782
  %v784 = vsub.f32 1.0, %v783
  %v785 = vmul.f32 %v782, %v784
  %v786 = vadd.f32 %v782, %v785
  %vm787 = vweird.f32 %v732
  %vm788 = vweird.f32 %v782
  %vm789 = vmor %vm787, %vm788
  %v790 = vsel %vm789, %v782, %v786
  %v791 = vand.u32 2147483647, %v732
  %vm792 = vcmp.eq.f32.partialorder %v791, 8.507059e+37
  %v793 = vand.u32 %v732, 2147483648
  %v794 = vor.u32 1.1754944e-38, %v793
  %v795 = vsel %vm792, %v794, %v790
  %v796 = vmul.f32 1.0, %v795
  %v797 = vrcp.pop %v733
  %v798 = vmul.f32 %v733, %v797
  %v799 = vsub.f32 1.0, %v798
  %v800 = vmul.f32 %v797, %v799
  %v801 = vadd.f32 %v797, %v800
  %vm802 = vweird.f32 %v733
  %vm803 = vweird.f32 %v797
  %vm804 = vmor %vm802, %vm803
  %v805 = vsel %vm804, %v797, %v801
  %v806 = vand.u32 2147483647, %v733
  %vm807 = vcmp.eq.f32.partialorder %v806, 8.507059e+37
  %v808 = vand.u32 %v733, 2147483648
  %v809 = vor.u32 1.1754944e-38, %v808
  %v810 = vsel %vm807, %v809, %v805
  %v811 = vmul.f32 1.0, %v810
  %v812 = vrcp.pop %v734
  %v813 = vmul.f32 %v734, %v812
  %v814 = vsub.f32 1.0, %v813
  %v815 = vmul.f32 %v812, %v814
  %v816 = vadd.f32 %v812, %v815
  %vm817 = vweird.f32 %v734
  %vm818 = vweird.f32 %v812
  %vm819 = vmor %vm817, %vm818
  %v820 = vsel %vm819, %v812, %v816
  %v821 = vand.u32 2147483647, %v734
  %vm822 = vcmp.eq.f32.partialorder %v821, 8.507059e+37
  %v823 = vand.u32 %v734, 2147483648
  %v824 = vor.u32 1.1754944e-38, %v823
  %v825 = vsel %vm822, %v824, %v820
  %v826 = vmul.f32 1.0, %v825
  %v827 = vrcp.pop %v735
  %v828 = vmul.f32 %v735, %v827
  %v829 = vsub.f32 1.0, %v828
  %v830 = vmul.f32 %v827, %v829
  %v831 = vadd.f32 %v827, %v830
  %vm832 = vweird.f32 %v735
  %vm833 = vweird.f32 %v827
  %vm834 = vmor %vm832, %vm833
  %v835 = vsel %vm834, %v827, %v831
  %v836 = vand.u32 2147483647, %v735
  %vm837 = vcmp.eq.f32.partialorder %v836, 8.507059e+37
  %v838 = vand.u32 %v735, 2147483648
  %v839 = vor.u32 1.1754944e-38, %v838
  %v840 = vsel %vm837, %v839, %v835
  %v841 = vmul.f32 1.0, %v840
  %v842 = vrcp.pop %v736
  %v843 = vmul.f32 %v736, %v842
  %v844 = vsub.f32 1.0, %v843
  %v845 = vmul.f32 %v842, %v844
  %v846 = vadd.f32 %v842, %v845
  %vm847 = vweird.f32 %v736
  %vm848 = vweird.f32 %v842
  %vm849 = vmor %vm847, %vm848
  %v850 = vsel %vm849, %v842, %v846
  %v851 = vand.u32 2147483647, %v736
  %vm852 = vcmp.eq.f32.partialorder %v851, 8.507059e+37
  %v853 = vand.u32 %v736, 2147483648
  %v854 = vor.u32 1.1754944e-38, %v853
  %v855 = vsel %vm852, %v854, %v850
  %v856 = vmul.f32 1.0, %v855
  %v857 = vxor.u32 %v634, 2147483648
  %v858 = vxor.u32 %v637, 2147483648
  %v859 = vxor.u32 %v640, 2147483648
  %v860 = vxor.u32 %v643, 2147483648
  %v861 = vxor.u32 %v646, 2147483648
  %v862 = vxor.u32 %v649, 2147483648
  %v863 = vxor.u32 %v652, 2147483648
  %v864 = vxor.u32 %v655, 2147483648
  %v865 = vmul.f32 %v857, 1.442695
  %v866 = vpow.pop %v865
  %v867 = vmul.f32 %v858, 1.442695
  %v868 = vpow.pop %v867
  %v869 = vmul.f32 %v859, 1.442695
  %v870 = vpow.pop %v869
  %v871 = vmul.f32 %v860, 1.442695
  %v872 = vpow.pop %v871
  %v873 = vmul.f32 %v861, 1.442695
  %v874 = vpow.pop %v873
  %v875 = vmul.f32 %v862, 1.442695
  %v876 = vpow.pop %v875
  %v877 = vmul.f32 %v863, 1.442695
  %v878 = vpow.pop %v877
  %v879 = vmul.f32 %v864, 1.442695
  %v880 = vpow.pop %v879
  %v881 = vadd.f32 %v866, 1.0
  %v882 = vadd.f32 %v868, 1.0
  %v883 = vadd.f32 %v870, 1.0
  %v884 = vadd.f32 %v872, 1.0
  %v885 = vadd.f32 %v874, 1.0
  %v886 = vadd.f32 %v876, 1.0
  %v887 = vadd.f32 %v878, 1.0
  %v888 = vadd.f32 %v880, 1.0
  %v889 = vrcp.pop %v881
  %v890 = vmul.f32 %v881, %v889
  %v891 = vsub.f32 1.0, %v890
  %v892 = vmul.f32 %v889, %v891
  %v893 = vadd.f32 %v889, %v892
  %vm894 = vweird.f32 %v881
  %vm895 = vweird.f32 %v889
  %vm896 = vmor %vm894, %vm895
  %v897 = vsel %vm896, %v889, %v893
  %v898 = vand.u32 2147483647, %v881
  %vm899 = vcmp.eq.f32.partialorder %v898, 8.507059e+37
  %v900 = vand.u32 %v881, 2147483648
  %v901 = vor.u32 1.1754944e-38, %v900
  %v902 = vsel %vm899, %v901, %v897
  %v903 = vmul.f32 1.0, %v902
  %v904 = vrcp.pop %v882
  %v905 = vmul.f32 %v882, %v904
  %v906 = vsub.f32 1.0, %v905
  %v907 = vmul.f32 %v904, %v906
  %v908 = vadd.f32 %v904, %v907
  %vm909 = vweird.f32 %v882
  %vm910 = vweird.f32 %v904
  %vm911 = vmor %vm909, %vm910
  %v912 = vsel %vm911, %v904, %v908
  %v913 = vand.u32 2147483647, %v882
  %vm914 = vcmp.eq.f32.partialorder %v913, 8.507059e+37
  %v915 = vand.u32 %v882, 2147483648
  %v916 = vor.u32 1.1754944e-38, %v915
  %v917 = vsel %vm914, %v916, %v912
  %v918 = vmul.f32 1.0, %v917
  %v919 = vrcp.pop %v883
  %v920 = vmul.f32 %v883, %v919
  %v921 = vsub.f32 1.0, %v920
  %v922 = vmul.f32 %v919, %v921
  %v923 = vadd.f32 %v919, %v922
  %vm924 = vweird.f32 %v883
  %vm925 = vweird.f32 %v919
  %vm926 = vmor %vm924, %vm925
  %v927 = vsel %vm926, %v919, %v923
  %v928 = vand.u32 2147483647, %v883
  %vm929 = vcmp.eq.f32.partialorder %v928, 8.507059e+37
  %v930 = vand.u32 %v883, 2147483648
  %v931 = vor.u32 1.1754944e-38, %v930
  %v932 = vsel %vm929, %v931, %v927
  %v933 = vmul.f32 1.0, %v932
  %v934 = vrcp.pop %v884
  %v935 = vmul.f32 %v884, %v934
  %v936 = vsub.f32 1.0, %v935
  %v937 = vmul.f32 %v934, %v936
  %v938 = vadd.f32 %v934, %v937
  %vm939 = vweird.f32 %v884
  %vm940 = vweird.f32 %v934
  %vm941 = vmor %vm939, %vm940
  %v942 = vsel %vm941, %v934, %v938
  %v943 = vand.u32 2147483647, %v884
  %vm944 = vcmp.eq.f32.partialorder %v943, 8.507059e+37
  %v945 = vand.u32 %v884, 2147483648
  %v946 = vor.u32 1.1754944e-38, %v945
  %v947 = vsel %vm944, %v946, %v942
  %v948 = vmul.f32 1.0, %v947
  %v949 = vrcp.pop %v885
  %v950 = vmul.f32 %v885, %v949
  %v951 = vsub.f32 1.0, %v950
  %v952 = vmul.f32 %v949, %v951
  %v953 = vadd.f32 %v949, %v952
  %vm954 = vweird.f32 %v885
  %vm955 = vweird.f32 %v949
  %vm956 = vmor %vm954, %vm955
  %v957 = vsel %vm956, %v949, %v953
  %v958 = vand.u32 2147483647, %v885
  %vm959 = vcmp.eq.f32.partialorder %v958, 8.507059e+37
  %v960 = vand.u32 %v885, 2147483648
  %v961 = vor.u32 1.1754944e-38, %v960
  %v962 = vsel %vm959, %v961, %v957
  %v963 = vmul.f32 1.0, %v962
  %v964 = vrcp.pop %v886
  %v965 = vmul.f32 %v886, %v964
  %v966 = vsub.f32 1.0, %v965
  %v967 = vmul.f32 %v964, %v966
  %v968 = vadd.f32 %v964, %v967
  %vm969 = vweird.f32 %v886
  %vm970 = vweird.f32 %v964
  %vm971 = vmor %vm969, %vm970
  %v972 = vsel %vm971, %v964, %v968
  %v973 = vand.u32 2147483647, %v886
  %vm974 = vcmp.eq.f32.partialorder %v973, 8.507059e+37
  %v975 = vand.u32 %v886, 2147483648
  %v976 = vor.u32 1.1754944e-38, %v975
  %v977 = vsel %vm974, %v976, %v972
  %v978 = vmul.f32 1.0, %v977
  %v979 = vrcp.pop %v887
  %v980 = vmul.f32 %v887, %v979
  %v981 = vsub.f32 1.0, %v980
  %v982 = vmul.f32 %v979, %v981
  %v983 = vadd.f32 %v979, %v982
  %vm984 = vweird.f32 %v887
  %vm985 = vweird.f32 %v979
  %vm986 = vmor %vm984, %vm985
  %v987 = vsel %vm986, %v979, %v983
  %v988 = vand.u32 2147483647, %v887
  %vm989 = vcmp.eq.f32.partialorder %v988, 8.507059e+37
  %v990 = vand.u32 %v887, 2147483648
  %v991 = vor.u32 1.1754944e-38, %v990
  %v992 = vsel %vm989, %v991, %v987
  %v993 = vmul.f32 1.0, %v992
  %v994 = vrcp.pop %v888
  %v995 = vmul.f32 %v888, %v994
  %v996 = vsub.f32 1.0, %v995
  %v997 = vmul.f32 %v994, %v996
  %v998 = vadd.f32 %v994, %v997
  %vm999 = vweird.f32 %v888
  %vm1000 = vweird.f32 %v994
  %vm1001 = vmor %vm999, %vm1000
  %v1002 = vsel %vm1001, %v994, %v998
  %v1003 = vand.u32 2147483647, %v888
  %vm1004 = vcmp.eq.f32.partialorder %v1003, 8.507059e+37
  %v1005 = vand.u32 %v888, 2147483648
  %v1006 = vor.u32 1.1754944e-38, %v1005
  %v1007 = vsel %vm1004, %v1006, %v1002
  %v1008 = vmul.f32 1.0, %v1007
  %v1009 = vtanh.pop %v658
  %v1010 = vtanh.pop %v661
  %v1011 = vtanh.pop %v664
  %v1012 = vtanh.pop %v667
  %v1013 = vtanh.pop %v670
  %v1014 = vtanh.pop %v673
  %v1015 = vtanh.pop %v676
  %v1016 = vtanh.pop %v679
  %v1017 = vxor.u32 %v682, 2147483648
  %v1018 = vxor.u32 %v685, 2147483648
  %v1019 = vxor.u32 %v688, 2147483648
  %v1020 = vxor.u32 %v691, 2147483648
  %v1021 = vxor.u32 %v694, 2147483648
  %v1022 = vxor.u32 %v697, 2147483648
  %v1023 = vxor.u32 %v700, 2147483648
  %v1024 = vxor.u32 %v703, 2147483648
  %v1025 = vmul.f32 %v1017, 1.442695
  %v1026 = vpow.pop %v1025
  %v1027 = vmul.f32 %v1018, 1.442695
  %v1028 = vpow.pop %v1027
  %v1029 = vmul.f32 %v1019, 1.442695
  %v1030 = vpow.pop %v1029
  %v1031 = vmul.f32 %v1020, 1.442695
  %v1032 = vpow.pop %v1031
  %v1033 = vmul.f32 %v1021, 1.442695
  %v1034 = vpow.pop %v1033
  %v1035 = vmul.f32 %v1022, 1.442695
  %v1036 = vpow.pop %v1035
  %v1037 = vmul.f32 %v1023, 1.442695
  %v1038 = vpow.pop %v1037
  %v1039 = vmul.f32 %v1024, 1.442695
  %v1040 = vpow.pop %v1039
  %v1041 = vadd.f32 %v1026, 1.0
  %v1042 = vadd.f32 %v1028, 1.0
  %v1043 = vadd.f32 %v1030, 1.0
  %v1044 = vadd.f32 %v1032, 1.0
  %v1045 = vadd.f32 %v1034, 1.0
  %v1046 = vadd.f32 %v1036, 1.0
  %v1047 = vadd.f32 %v1038, 1.0
  %v1048 = vadd.f32 %v1040, 1.0
  %v1049 = vrcp.pop %v1041
  %v1050 = vmul.f32 %v1041, %v1049
  %v1051 = vsub.f32 1.0, %v1050
  %v1052 = vmul.f32 %v1049, %v1051
  %v1053 = vadd.f32 %v1049, %v1052
  %vm1054 = vweird.f32 %v1041
  %vm1055 = vweird.f32 %v1049
  %vm1056 = vmor %vm1054, %vm1055
  %v1057 = vsel %vm1056, %v1049, %v1053
  %v1058 = vand.u32 2147483647, %v1041
  %vm1059 = vcmp.eq.f32.partialorder %v1058, 8.507059e+37
  %v1060 = vand.u32 %v1041, 2147483648
  %v1061 = vor.u32 1.1754944e-38, %v1060
  %v1062 = vsel %vm1059, %v1061, %v1057
  %v1063 = vmul.f32 1.0, %v1062
  %v1064 = vrcp.pop %v1042
  %v1065 = vmul.f32 %v1042, %v1064
  %v1066 = vsub.f32 1.0, %v1065
  %v1067 = vmul.f32 %v1064, %v1066
  %v1068 = vadd.f32 %v1064, %v1067
  %vm1069 = vweird.f32 %v1042
  %vm1070 = vweird.f32 %v1064
  %vm1071 = vmor %vm1069, %vm1070
  %v1072 = vsel %vm1071, %v1064, %v1068
  %v1073 = vand.u32 2147483647, %v1042
  %vm1074 = vcmp.eq.f32.partialorder %v1073, 8.507059e+37
  %v1075 = vand.u32 %v1042, 2147483648
  %v1076 = vor.u32 1.1754944e-38, %v1075
  %v1077 = vsel %vm1074, %v1076, %v1072
  %v1078 = vmul.f32 1.0, %v1077
  %v1079 = vrcp.pop %v1043
  %v1080 = vmul.f32 %v1043, %v1079
  %v1081 = vsub.f32 1.0, %v1080
  %v1082 = vmul.f32 %v1079, %v1081
  %v1083 = vadd.f32 %v1079, %v1082
  %vm1084 = vweird.f32 %v1043
  %vm1085 = vweird.f32 %v1079
  %vm1086 = vmor %vm1084, %vm1085
  %v1087 = vsel %vm1086, %v1079, %v1083
  %v1088 = vand.u32 2147483647, %v1043
  %vm1089 = vcmp.eq.f32.partialorder %v1088, 8.507059e+37
  %v1090 = vand.u32 %v1043, 2147483648
  %v1091 = vor.u32 1.1754944e-38, %v1090
  %v1092 = vsel %vm1089, %v1091, %v1087
  %v1093 = vmul.f32 1.0, %v1092
  %v1094 = vrcp.pop %v1044
  %v1095 = vmul.f32 %v1044, %v1094
  %v1096 = vsub.f32 1.0, %v1095
  %v1097 = vmul.f32 %v1094, %v1096
  %v1098 = vadd.f32 %v1094, %v1097
  %vm1099 = vweird.f32 %v1044
  %vm1100 = vweird.f32 %v1094
  %vm1101 = vmor %vm1099, %vm1100
  %v1102 = vsel %vm1101, %v1094, %v1098
  %v1103 = vand.u32 2147483647, %v1044
  %vm1104 = vcmp.eq.f32.partialorder %v1103, 8.507059e+37
  %v1105 = vand.u32 %v1044, 2147483648
  %v1106 = vor.u32 1.1754944e-38, %v1105
  %v1107 = vsel %vm1104, %v1106, %v1102
  %v1108 = vmul.f32 1.0, %v1107
  %v1109 = vrcp.pop %v1045
  %v1110 = vmul.f32 %v1045, %v1109
  %v1111 = vsub.f32 1.0, %v1110
  %v1112 = vmul.f32 %v1109, %v1111
  %v1113 = vadd.f32 %v1109, %v1112
  %vm1114 = vweird.f32 %v1045
  %vm1115 = vweird.f32 %v1109
  %vm1116 = vmor %vm1114, %vm1115
  %v1117 = vsel %vm1116, %v1109, %v1113
  %v1118 = vand.u32 2147483647, %v1045
  %vm1119 = vcmp.eq.f32.partialorder %v1118, 8.507059e+37
  %v1120 = vand.u32 %v1045, 2147483648
  %v1121 = vor.u32 1.1754944e-38, %v1120
  %v1122 = vsel %vm1119, %v1121, %v1117
  %v1123 = vmul.f32 1.0, %v1122
  %v1124 = vrcp.pop %v1046
  %v1125 = vmul.f32 %v1046, %v1124
  %v1126 = vsub.f32 1.0, %v1125
  %v1127 = vmul.f32 %v1124, %v1126
  %v1128 = vadd.f32 %v1124, %v1127
  %vm1129 = vweird.f32 %v1046
  %vm1130 = vweird.f32 %v1124
  %vm1131 = vmor %vm1129, %vm1130
  %v1132 = vsel %vm1131, %v1124, %v1128
  %v1133 = vand.u32 2147483647, %v1046
  %vm1134 = vcmp.eq.f32.partialorder %v1133, 8.507059e+37
  %v1135 = vand.u32 %v1046, 2147483648
  %v1136 = vor.u32 1.1754944e-38, %v1135
  %v1137 = vsel %vm1134, %v1136, %v1132
  %v1138 = vmul.f32 1.0, %v1137
  %v1139 = vrcp.pop %v1047
  %v1140 = vmul.f32 %v1047, %v1139
  %v1141 = vsub.f32 1.0, %v1140
  %v1142 = vmul.f32 %v1139, %v1141
  %v1143 = vadd.f32 %v1139, %v1142
  %vm1144 = vweird.f32 %v1047
  %vm1145 = vweird.f32 %v1139
  %vm1146 = vmor %vm1144, %vm1145
  %v1147 = vsel %vm1146, %v1139, %v1143
  %v1148 = vand.u32 2147483647, %v1047
  %vm1149 = vcmp.eq.f32.partialorder %v1148, 8.507059e+37
  %v1150 = vand.u32 %v1047, 2147483648
  %v1151 = vor.u32 1.1754944e-38, %v1150
  %v1152 = vsel %vm1149, %v1151, %v1147
  %v1153 = vmul.f32 1.0, %v1152
  %v1154 = vrcp.pop %v1048
  %v1155 = vmul.f32 %v1048, %v1154
  %v1156 = vsub.f32 1.0, %v1155
  %v1157 = vmul.f32 %v1154, %v1156
  %v1158 = vadd.f32 %v1154, %v1157
  %vm1159 = vweird.f32 %v1048
  %vm1160 = vweird.f32 %v1154
  %vm1161 = vmor %vm1159, %vm1160
  %v1162 = vsel %vm1161, %v1154, %v1158
  %v1163 = vand.u32 2147483647, %v1048
  %vm1164 = vcmp.eq.f32.partialorder %v1163, 8.507059e+37
  %v1165 = vand.u32 %v1048, 2147483648
  %v1166 = vor.u32 1.1754944e-38, %v1165
  %v1167 = vsel %vm1164, %v1166, %v1162
  %v1168 = vmul.f32 1.0, %v1167
  %v1169 = vmul.f32 %v903, 0.0
  %v1170 = vmul.f32 %v918, 0.0
  %v1171 = vmul.f32 %v933, 0.0
  %v1172 = vmul.f32 %v948, 0.0
  %v1173 = vmul.f32 %v963, 0.0
  %v1174 = vmul.f32 %v978, 0.0
  %v1175 = vmul.f32 %v993, 0.0
  %v1176 = vmul.f32 %v1008, 0.0
  %v1177 = vmul.f32 %v751, %v1009
  %v1178 = vmul.f32 %v766, %v1010
  %v1179 = vmul.f32 %v781, %v1011
  %v1180 = vmul.f32 %v796, %v1012
  %v1181 = vmul.f32 %v811, %v1013
  %v1182 = vmul.f32 %v826, %v1014
  %v1183 = vmul.f32 %v841, %v1015
  %v1184 = vmul.f32 %v856, %v1016
  %v1185 = vadd.f32 %v1169, %v1177
  %v1186 = vadd.f32 %v1170, %v1178
  %v1187 = vadd.f32 %v1171, %v1179
  %v1188 = vadd.f32 %v1172, %v1180
  %v1189 = vadd.f32 %v1173, %v1181
  %v1190 = vadd.f32 %v1174, %v1182
  %v1191 = vadd.f32 %v1175, %v1183
  %v1192 = vadd.f32 %v1176, %v1184
  %v1193 = vxor.u32 %v1185, 2147483648
  %v1194 = vxor.u32 %v1186, 2147483648
  %v1195 = vxor.u32 %v1187, 2147483648
  %v1196 = vxor.u32 %v1188, 2147483648
  %v1197 = vxor.u32 %v1189, 2147483648
  %v1198 = vxor.u32 %v1190, 2147483648
  %v1199 = vxor.u32 %v1191, 2147483648
  %v1200 = vxor.u32 %v1192, 2147483648
  %v1201 = vmul.f32 %v1193, 1.442695
  %v1202 = vpow.pop %v1201
  %v1203 = vmul.f32 %v1194, 1.442695
  %v1204 = vpow.pop %v1203
  %v1205 = vmul.f32 %v1195, 1.442695
  %v1206 = vpow.pop %v1205
  %v1207 = vmul.f32 %v1196, 1.442695
  %v1208 = vpow.pop %v1207
  %v1209 = vmul.f32 %v1197, 1.442695
  %v1210 = vpow.pop %v1209
  %v1211 = vmul.f32 %v1198, 1.442695
  %v1212 = vpow.pop %v1211
  %v1213 = vmul.f32 %v1199, 1.442695
  %v1214 = vpow.pop %v1213
  %v1215 = vmul.f32 %v1200, 1.442695
  %v1216 = vpow.pop %v1215
  %v1217 = vadd.f32 %v1202, 1.0
  %v1218 = vadd.f32 %v1204, 1.0
  %v1219 = vadd.f32 %v1206, 1.0
  %v1220 = vadd.f32 %v1208, 1.0
  %v1221 = vadd.f32 %v1210, 1.0
  %v1222 = vadd.f32 %v1212, 1.0
  %v1223 = vadd.f32 %v1214, 1.0
  %v1224 = vadd.f32 %v1216, 1.0
  %v1225 = vrcp.pop %v1217
  %v1226 = vmul.f32 %v1217, %v1225
  %v1227 = vsub.f32 1.0, %v1226
  %v1228 = vmul.f32 %v1225, %v1227
  %v1229 = vadd.f32 %v1225, %v1228
  %vm1230 = vweird.f32 %v1217
  %vm1231 = vweird.f32 %v1225
  %vm1232 = vmor %vm1230, %vm1231
  %v1233 = vsel %vm1232, %v1225, %v1229
  %v1234 = vand.u32 2147483647, %v1217
  %vm1235 = vcmp.eq.f32.partialorder %v1234, 8.507059e+37
  %v1236 = vand.u32 %v1217, 2147483648
  %v1237 = vor.u32 1.1754944e-38, %v1236
  %v1238 = vsel %vm1235, %v1237, %v1233
  %v1239 = vmul.f32 1.0, %v1238
  %v1240 = vrcp.pop %v1218
  %v1241 = vmul.f32 %v1218, %v1240
  %v1242 = vsub.f32 1.0, %v1241
  %v1243 = vmul.f32 %v1240, %v1242
  %v1244 = vadd.f32 %v1240, %v1243
  %vm1245 = vweird.f32 %v1218
  %vm1246 = vweird.f32 %v1240
  %vm1247 = vmor %vm1245, %vm1246
  %v1248 = vsel %vm1247, %v1240, %v1244
  %v1249 = vand.u32 2147483647, %v1218
  %vm1250 = vcmp.eq.f32.partialorder %v1249, 8.507059e+37
  %v1251 = vand.u32 %v1218, 2147483648
  %v1252 = vor.u32 1.1754944e-38, %v1251
  %v1253 = vsel %vm1250, %v1252, %v1248
  %v1254 = vmul.f32 1.0, %v1253
  %v1255 = vrcp.pop %v1219
  %v1256 = vmul.f32 %v1219, %v1255
  %v1257 = vsub.f32 1.0, %v1256
  %v1258 = vmul.f32 %v1255, %v1257
  %v1259 = vadd.f32 %v1255, %v1258
  %vm1260 = vweird.f32 %v1219
  %vm1261 = vweird.f32 %v1255
  %vm1262 = vmor %vm1260, %vm1261
  %v1263 = vsel %vm1262, %v1255, %v1259
  %v1264 = vand.u32 2147483647, %v1219
  %vm1265 = vcmp.eq.f32.partialorder %v1264, 8.507059e+37
  %v1266 = vand.u32 %v1219, 2147483648
  %v1267 = vor.u32 1.1754944e-38, %v1266
  %v1268 = vsel %vm1265, %v1267, %v1263
  %v1269 = vmul.f32 1.0, %v1268
  %v1270 = vrcp.pop %v1220
  %v1271 = vmul.f32 %v1220, %v1270
  %v1272 = vsub.f32 1.0, %v1271
  %v1273 = vmul.f32 %v1270, %v1272
  %v1274 = vadd.f32 %v1270, %v1273
  %vm1275 = vweird.f32 %v1220
  %vm1276 = vweird.f32 %v1270
  %vm1277 = vmor %vm1275, %vm1276
  %v1278 = vsel %vm1277, %v1270, %v1274
  %v1279 = vand.u32 2147483647, %v1220
  %vm1280 = vcmp.eq.f32.partialorder %v1279, 8.507059e+37
  %v1281 = vand.u32 %v1220, 2147483648
  %v1282 = vor.u32 1.1754944e-38, %v1281
  %v1283 = vsel %vm1280, %v1282, %v1278
  %v1284 = vmul.f32 1.0, %v1283
  %v1285 = vrcp.pop %v1221
  %v1286 = vmul.f32 %v1221, %v1285
  %v1287 = vsub.f32 1.0, %v1286
  %v1288 = vmul.f32 %v1285, %v1287
  %v1289 = vadd.f32 %v1285, %v1288
  %vm1290 = vweird.f32 %v1221
  %vm1291 = vweird.f32 %v1285
  %vm1292 = vmor %vm1290, %vm1291
  %v1293 = vsel %vm1292, %v1285, %v1289
  %v1294 = vand.u32 2147483647, %v1221
  %vm1295 = vcmp.eq.f32.partialorder %v1294, 8.507059e+37
  %v1296 = vand.u32 %v1221, 2147483648
  %v1297 = vor.u32 1.1754944e-38, %v1296
  %v1298 = vsel %vm1295, %v1297, %v1293
  %v1299 = vmul.f32 1.0, %v1298
  %v1300 = vrcp.pop %v1222
  %v1301 = vmul.f32 %v1222, %v1300
  %v1302 = vsub.f32 1.0, %v1301
  %v1303 = vmul.f32 %v1300, %v1302
  %v1304 = vadd.f32 %v1300, %v1303
  %vm1305 = vweird.f32 %v1222
  %vm1306 = vweird.f32 %v1300
  %vm1307 = vmor %vm1305, %vm1306
  %v1308 = vsel %vm1307, %v1300, %v1304
  %v1309 = vand.u32 2147483647, %v1222
  %vm1310 = vcmp.eq.f32.partialorder %v1309, 8.507059e+37
  %v1311 = vand.u32 %v1222, 2147483648
  %v1312 = vor.u32 1.1754944e-38, %v1311
  %v1313 = vsel %vm1310, %v1312, %v1308
  %v1314 = vmul.f32 1.0, %v1313
  %v1315 = vrcp.pop %v1223
  %v1316 = vmul.f32 %v1223, %v1315
  %v1317 = vsub.f32 1.0, %v1316
  %v1318 = vmul.f32 %v1315, %v1317
  %v1319 = vadd.f32 %v1315, %v1318
  %vm1320 = vweird.f32 %v1223
  %vm1321 = vweird.f32 %v1315
  %vm1322 = vmor %vm1320, %vm1321
  %v1323 = vsel %vm1322, %v1315, %v1319
  %v1324 = vand.u32 2147483647, %v1223
  %vm1325 = vcmp.eq.f32.partialorder %v1324, 8.507059e+37
  %v1326 = vand.u32 %v1223, 2147483648
  %v1327 = vor.u32 1.1754944e-38, %v1326
  %v1328 = vsel %vm1325, %v1327, %v1323
  %v1329 = vmul.f32 1.0, %v1328
  %v1330 = vrcp.pop %v1224
  %v1331 = vmul.f32 %v1224, %v1330
  %v1332 = vsub.f32 1.0, %v1331
  %v1333 = vmul.f32 %v1330, %v1332
  %v1334 = vadd.f32 %v1330, %v1333
  %vm1335 = vweird.f32 %v1224
  %vm1336 = vweird.f32 %v1330
  %vm1337 = vmor %vm1335, %vm1336
  %v1338 = vsel %vm1337, %v1330, %v1334
  %v1339 = vand.u32 2147483647, %v1224
  %vm1340 = vcmp.eq.f32.partialorder %v1339, 8.507059e+37
  %v1341 = vand.u32 %v1224, 2147483648
  %v1342 = vor.u32 1.1754944e-38, %v1341
  %v1343 = vsel %vm1340, %v1342, %v1338
  %v1344 = vmul.f32 1.0, %v1343
  %v1345 = vmul.f32 %v1063, %v1239
  %v1346 = vmul.f32 %v1078, %v1254
  %v1347 = vmul.f32 %v1093, %v1269
  %v1348 = vmul.f32 %v1108, %v1284
  %v1349 = vmul.f32 %v1123, %v1299
  %v1350 = vmul.f32 %v1138, %v1314
  %v1351 = vmul.f32 %v1153, %v1329
  %v1352 = vmul.f32 %v1168, %v1344
  %vm1353 = vcmask 15360
  %v1355 = vsel %vm1353, %v1345, 0
  %v1358 = vsel %vm1353, %v1346, 0
  %v1361 = vsel %vm1353, %v1347, 0
  %v1364 = vsel %vm1353, %v1348, 0
  %v1367 = vsel %vm1353, %v1349, 0
  %v1370 = vsel %vm1353, %v1350, 0
  %v1373 = vsel %vm1353, %v1351, 0
  %v1376 = vsel %vm1353, %v1352, 0
  %vm1378 = vcmask 1041408
  %v1380 = vsel %vm1378, %v53, 0
  %1382 = vmatpush.msra.mxu0 0.0
  %1383 = vmatpush.msra.mxu0 0.0
  %1384 = vmatpush.msra.mxu0 0.0
  %1385 = vmatpush.msra.mxu0 0.0
  %1386 = vmatpush.msra.mxu0 0.0
  %1387 = vmatpush.msra.mxu0 0.0
  %1388 = vmatpush.msra.mxu0 0.0
  %1389 = vmatpush.msra.mxu0 0.0
  %1390 = vmatpush.msra.mxu0 0.0
  %1391 = vmatpush.msra.mxu0 0.0
  %1392 = vmatpush.msra.mxu0 0.0
  %1393 = vmatpush.msra.mxu0 0.0
  %1394 = vmatpush.msra.mxu0 0.0
  %1395 = vmatpush.msra.mxu0 0.0
  %1396 = vmatpush.msra.mxu0 0.0
  %1397 = vmatpush.msra.mxu0 %v1380
  %1398 = vmatmul.f32.gmra.mxu0 %v1355
  %v1399 = vpop.f32.mrf.mxu0
  %v1400 = vadd.f32 0.0, %v1399
  %1401 = vmatmul.f32.gmra.mxu0 %v1358
  %v1402 = vpop.f32.mrf.mxu0
  %v1403 = vadd.f32 0.0, %v1402
  %1404 = vmatmul.f32.gmra.mxu0 %v1361
  %v1405 = vpop.f32.mrf.mxu0
  %v1406 = vadd.f32 0.0, %v1405
  %1407 = vmatmul.f32.gmra.mxu0 %v1364
  %v1408 = vpop.f32.mrf.mxu0
  %v1409 = vadd.f32 0.0, %v1408
  %1410 = vmatmul.f32.gmra.mxu0 %v1367
  %v1411 = vpop.f32.mrf.mxu0
  %v1412 = vadd.f32 0.0, %v1411
  %1413 = vmatmul.f32.gmra.mxu0 %v1370
  %v1414 = vpop.f32.mrf.mxu0
  %v1415 = vadd.f32 0.0, %v1414
  %1416 = vmatmul.f32.gmra.mxu0 %v1373
  %v1417 = vpop.f32.mrf.mxu0
  %v1418 = vadd.f32 0.0, %v1417
  %1419 = vmatmul.f32.gmra.mxu0 %v1376
  %v1420 = vpop.f32.mrf.mxu0
  %v1421 = vadd.f32 0.0, %v1420
  %1422 = vdwg.mxu0
  %v1423 = vmul.f32 %v177, %v1400
  %v1424 = vmul.f32 %v180, %v1403
  %v1425 = vmul.f32 %v183, %v1406
  %v1426 = vmul.f32 %v186, %v1409
  %v1427 = vmul.f32 %v189, %v1412
  %v1428 = vmul.f32 %v192, %v1415
  %v1429 = vmul.f32 %v195, %v1418
  %v1430 = vmul.f32 %v198, %v1421
  %v1431 = vadd.f32 %v1423, %v29
  %v1432 = vadd.f32 %v1424, %v30
  %v1433 = vadd.f32 %v1425, %v31
  %v1434 = vadd.f32 %v1426, %v32
  %v1435 = vadd.f32 %v1427, %v33
  %v1436 = vadd.f32 %v1428, %v34
  %v1437 = vadd.f32 %v1429, %v35
  %v1438 = vadd.f32 %v1430, %v36
  %v1439 = vmax.f32 %v1431, 0.0
  %v1440 = vmax.f32 %v1432, 0.0
  %v1441 = vmax.f32 %v1433, 0.0
  %v1442 = vmax.f32 %v1434, 0.0
  %v1443 = vmax.f32 %v1435, 0.0
  %v1444 = vmax.f32 %v1436, 0.0
  %v1445 = vmax.f32 %v1437, 0.0
  %v1446 = vmax.f32 %v1438, 0.0
  %s1447 = scalar_lea.vmem %s1, 64
  %v1448 = vld [vmem:[%s1447] sm:$0xff]
  %v1449 = vld [vmem:[%s1447 + $0x8] sm:$0xff]
  %v1450 = vld [vmem:[%s1447 + $0x10] sm:$0xff]
  %v1451 = vld [vmem:[%s1447 + $0x18] sm:$0xff]
  %v1452 = vld [vmem:[%s1447 + $0x20] sm:$0xff]
  %v1453 = vld [vmem:[%s1447 + $0x28] sm:$0xff]
  %v1454 = vld [vmem:[%s1447 + $0x30] sm:$0xff]
  %v1455 = vld [vmem:[%s1447 + $0x38] sm:$0xff]
  %v1457 = vsel %vm134, %v1448, 0
  %v1460 = vsel %vm134, %v1449, 0
  %v1463 = vsel %vm134, %v1450, 0
  %v1466 = vsel %vm134, %v1451, 0
  %v1469 = vsel %vm134, %v1452, 0
  %v1472 = vsel %vm134, %v1453, 0
  %v1475 = vsel %vm134, %v1454, 0
  %v1478 = vsel %vm134, %v1455, 0
  %1480 = vmatpush.msra.mxu0 0.0
  %1481 = vmatpush.msra.mxu0 0.0
  %1482 = vmatpush.msra.mxu0 0.0
  %1483 = vmatpush.msra.mxu0 0.0
  %1484 = vmatpush.msra.mxu0 0.0
  %1485 = vmatpush.msra.mxu0 0.0
  %1486 = vmatpush.msra.mxu0 0.0
  %1487 = vmatpush.msra.mxu0 0.0
  %1488 = vmatpush.msra.mxu0 %v1446
  %1489 = vmatpush.msra.mxu0 %v1445
  %1490 = vmatpush.msra.mxu0 %v1444
  %1491 = vmatpush.msra.mxu0 %v1443
  %1492 = vmatpush.msra.mxu0 %v1442
  %1493 = vmatpush.msra.mxu0 %v1441
  %1494 = vmatpush.msra.mxu0 %v1440
  %1495 = vmatpush.msra.mxu0 %v1439
  %1496 = vmatmul.f32.gmra.mxu0 %v1457
  %v1497 = vpop.f32.mrf.mxu0
  %v1498 = vadd.f32 0.0, %v1497
  %1499 = vmatmul.f32.gmra.mxu0 %v1460
  %v1500 = vpop.f32.mrf.mxu0
  %v1501 = vadd.f32 0.0, %v1500
  %1502 = vmatmul.f32.gmra.mxu0 %v1463
  %v1503 = vpop.f32.mrf.mxu0
  %v1504 = vadd.f32 0.0, %v1503
  %1505 = vmatmul.f32.gmra.mxu0 %v1466
  %v1506 = vpop.f32.mrf.mxu0
  %v1507 = vadd.f32 0.0, %v1506
  %1508 = vmatmul.f32.gmra.mxu0 %v1469
  %v1509 = vpop.f32.mrf.mxu0
  %v1510 = vadd.f32 0.0, %v1509
  %1511 = vmatmul.f32.gmra.mxu0 %v1472
  %v1512 = vpop.f32.mrf.mxu0
  %v1513 = vadd.f32 0.0, %v1512
  %1514 = vmatmul.f32.gmra.mxu0 %v1475
  %v1515 = vpop.f32.mrf.mxu0
  %v1516 = vadd.f32 0.0, %v1515
  %1517 = vmatmul.f32.gmra.mxu0 %v1478
  %v1518 = vpop.f32.mrf.mxu0
  %v1519 = vadd.f32 0.0, %v1518
  %1520 = vdwg.mxu0
  %1521 = vmatpush.msra.mxu0 %v52
  %1522 = vmatpush.msra.mxu0 %v51
  %1523 = vmatpush.msra.mxu0 %v50
  %1524 = vmatpush.msra.mxu0 %v49
  %1525 = vmatpush.msra.mxu0 %v48
  %1526 = vmatpush.msra.mxu0 %v47
  %1527 = vmatpush.msra.mxu0 %v46
  %1528 = vmatpush.msra.mxu0 %v45
  %1529 = vmatpush.msra.mxu0 %v44
  %1530 = vmatpush.msra.mxu0 %v43
  %1531 = vmatpush.msra.mxu0 %v42
  %1532 = vmatpush.msra.mxu0 %v41
  %1533 = vmatpush.msra.mxu0 %v40
  %1534 = vmatpush.msra.mxu0 %v39
  %1535 = vmatpush.msra.mxu0 %v38
  %1536 = vmatpush.msra.mxu0 %v37
  %1537 = vmatmul.f32.gmra.mxu0 %v1439
  %v1538 = vpop.f32.mrf.mxu0
  %v1539 = vadd.f32 0.0, %v1538
  %1540 = vmatmul.f32.gmra.mxu0 %v1440
  %v1541 = vpop.f32.mrf.mxu0
  %v1542 = vadd.f32 0.0, %v1541
  %1543 = vmatmul.f32.gmra.mxu0 %v1441
  %v1544 = vpop.f32.mrf.mxu0
  %v1545 = vadd.f32 0.0, %v1544
  %1546 = vmatmul.f32.gmra.mxu0 %v1442
  %v1547 = vpop.f32.mrf.mxu0
  %v1548 = vadd.f32 0.0, %v1547
  %1549 = vmatmul.f32.gmra.mxu0 %v1443
  %v1550 = vpop.f32.mrf.mxu0
  %v1551 = vadd.f32 0.0, %v1550
  %1552 = vmatmul.f32.gmra.mxu0 %v1444
  %v1553 = vpop.f32.mrf.mxu0
  %v1554 = vadd.f32 0.0, %v1553
  %1555 = vmatmul.f32.gmra.mxu0 %v1445
  %v1556 = vpop.f32.mrf.mxu0
  %v1557 = vadd.f32 0.0, %v1556
  %1558 = vmatmul.f32.gmra.mxu0 %v1446
  %v1559 = vpop.f32.mrf.mxu0
  %v1560 = vadd.f32 0.0, %v1559
  %1561 = vdwg.mxu0
  %1562 = vmatpush.msra.mxu0 0.0
  %1563 = vmatpush.msra.mxu0 0.0
  %1564 = vmatpush.msra.mxu0 0.0
  %1565 = vmatpush.msra.mxu0 0.0
  %1566 = vmatpush.msra.mxu0 0.0
  %1567 = vmatpush.msra.mxu0 0.0
  %1568 = vmatpush.msra.mxu0 0.0
  %1569 = vmatpush.msra.mxu0 0.0
  %1570 = vmatpush.msra.mxu0 %v1560
  %1571 = vmatpush.msra.mxu0 %v1557
  %1572 = vmatpush.msra.mxu0 %v1554
  %1573 = vmatpush.msra.mxu0 %v1551
  %1574 = vmatpush.msra.mxu0 %v1548
  %1575 = vmatpush.msra.mxu0 %v1545
  %1576 = vmatpush.msra.mxu0 %v1542
  %1577 = vmatpush.msra.mxu0 %v1539
  %1578 = vmatmul.f32.gmra.mxu0 %v1457
  %v1579 = vpop.f32.mrf.mxu0
  %v1580 = vadd.f32 0.0, %v1579
  %1581 = vmatmul.f32.gmra.mxu0 %v1460
  %v1582 = vpop.f32.mrf.mxu0
  %v1583 = vadd.f32 0.0, %v1582
  %1584 = vmatmul.f32.gmra.mxu0 %v1463
  %v1585 = vpop.f32.mrf.mxu0
  %v1586 = vadd.f32 0.0, %v1585
  %1587 = vmatmul.f32.gmra.mxu0 %v1466
  %v1588 = vpop.f32.mrf.mxu0
  %v1589 = vadd.f32 0.0, %v1588
  %1590 = vmatmul.f32.gmra.mxu0 %v1469
  %v1591 = vpop.f32.mrf.mxu0
  %v1592 = vadd.f32 0.0, %v1591
  %1593 = vmatmul.f32.gmra.mxu0 %v1472
  %v1594 = vpop.f32.mrf.mxu0
  %v1595 = vadd.f32 0.0, %v1594
  %1596 = vmatmul.f32.gmra.mxu0 %v1475
  %v1597 = vpop.f32.mrf.mxu0
  %v1598 = vadd.f32 0.0, %v1597
  %1599 = vmatmul.f32.gmra.mxu0 %v1478
  %v1600 = vpop.f32.mrf.mxu0
  %v1601 = vadd.f32 0.0, %v1600
  %1602 = vdwg.mxu0
  %1603 = vmatpush.msra.mxu0 %v1352
  %1604 = vmatpush.msra.mxu0 %v1351
  %1605 = vmatpush.msra.mxu0 %v1350
  %1606 = vmatpush.msra.mxu0 %v1349
  %1607 = vmatpush.msra.mxu0 %v1348
  %1608 = vmatpush.msra.mxu0 %v1347
  %1609 = vmatpush.msra.mxu0 %v1346
  %1610 = vmatpush.msra.mxu0 %v1345
  %1611 = vmatpush.msra.mxu0 %v1601
  %1612 = vmatpush.msra.mxu0 %v1598
  %1613 = vmatpush.msra.mxu0 %v1595
  %1614 = vmatpush.msra.mxu0 %v1592
  %1615 = vmatpush.msra.mxu0 %v1589
  %1616 = vmatpush.msra.mxu0 %v1586
  %1617 = vmatpush.msra.mxu0 %v1583
  %1618 = vmatpush.msra.mxu0 %v1580
  %1619 = vmatmul.f32.gmra.mxu0 %v54
  %v1620 = vpop.f32.mrf.mxu0
  %v1621 = vadd.f32 %v285, %v1620
  %1622 = vmatmul.f32.gmra.mxu0 %v55
  %v1623 = vpop.f32.mrf.mxu0
  %v1624 = vadd.f32 %v290, %v1623
  %1625 = vmatmul.f32.gmra.mxu0 %v56
  %v1626 = vpop.f32.mrf.mxu0
  %v1627 = vadd.f32 %v295, %v1626
  %1628 = vmatmul.f32.gmra.mxu0 %v57
  %v1629 = vpop.f32.mrf.mxu0
  %v1630 = vadd.f32 %v300, %v1629
  %1631 = vdwg.mxu0
  %v1632 = vmax.f32 %v1621, 0.0
  %v1633 = vmax.f32 %v1624, 0.0
  %v1634 = vmax.f32 %v1627, 0.0
  %v1635 = vmax.f32 %v1630, 0.0
  %1636 = vmatpush.msra.mxu0 0.0
  %1637 = vmatpush.msra.mxu0 0.0
  %1638 = vmatpush.msra.mxu0 0.0
  %1639 = vmatpush.msra.mxu0 0.0
  %1640 = vmatpush.msra.mxu0 0.0
  %1641 = vmatpush.msra.mxu0 0.0
  %1642 = vmatpush.msra.mxu0 0.0
  %1643 = vmatpush.msra.mxu0 0.0
  %1644 = vmatpush.msra.mxu0 0.0
  %1645 = vmatpush.msra.mxu0 0.0
  %1646 = vmatpush.msra.mxu0 0.0
  %1647 = vmatpush.msra.mxu0 0.0
  %1648 = vmatpush.msra.mxu0 %v1635
  %1649 = vmatpush.msra.mxu0 %v1634
  %1650 = vmatpush.msra.mxu0 %v1633
  %1651 = vmatpush.msra.mxu0 %v1632
  %1652 = vmatmul.f32.gmra.mxu0 %v497
  %v1653 = vpop.f32.mrf.mxu0
  %v1654 = vadd.f32 %v338, %v1653
  %1655 = vmatmul.f32.gmra.mxu0 %v500
  %v1656 = vpop.f32.mrf.mxu0
  %v1657 = vadd.f32 %v343, %v1656
  %1658 = vmatmul.f32.gmra.mxu0 %v503
  %v1659 = vpop.f32.mrf.mxu0
  %v1660 = vadd.f32 %v348, %v1659
  %1661 = vmatmul.f32.gmra.mxu0 %v506
  %v1662 = vpop.f32.mrf.mxu0
  %v1663 = vadd.f32 %v353, %v1662
  %1664 = vmatmul.f32.gmra.mxu0 %v509
  %v1665 = vpop.f32.mrf.mxu0
  %v1666 = vadd.f32 %v358, %v1665
  %1667 = vmatmul.f32.gmra.mxu0 %v512
  %v1668 = vpop.f32.mrf.mxu0
  %v1669 = vadd.f32 %v363, %v1668
  %1670 = vmatmul.f32.gmra.mxu0 %v515
  %v1671 = vpop.f32.mrf.mxu0
  %v1672 = vadd.f32 %v368, %v1671
  %1673 = vmatmul.f32.gmra.mxu0 %v518
  %v1674 = vpop.f32.mrf.mxu0
  %v1675 = vadd.f32 %v373, %v1674
  %1676 = vmatmul.f32.gmra.mxu0 %v521
  %v1677 = vpop.f32.mrf.mxu0
  %v1678 = vadd.f32 %v378, %v1677
  %1679 = vmatmul.f32.gmra.mxu0 %v524
  %v1680 = vpop.f32.mrf.mxu0
  %v1681 = vadd.f32 %v383, %v1680
  %1682 = vmatmul.f32.gmra.mxu0 %v527
  %v1683 = vpop.f32.mrf.mxu0
  %v1684 = vadd.f32 %v388, %v1683
  %1685 = vmatmul.f32.gmra.mxu0 %v530
  %v1686 = vpop.f32.mrf.mxu0
  %v1687 = vadd.f32 %v393, %v1686
  %1688 = vmatmul.f32.gmra.mxu0 %v533
  %v1689 = vpop.f32.mrf.mxu0
  %v1690 = vadd.f32 %v398, %v1689
  %1691 = vmatmul.f32.gmra.mxu0 %v536
  %v1692 = vpop.f32.mrf.mxu0
  %v1693 = vadd.f32 %v403, %v1692
  %1694 = vmatmul.f32.gmra.mxu0 %v539
  %v1695 = vpop.f32.mrf.mxu0
  %v1696 = vadd.f32 %v408, %v1695
  %1697 = vmatmul.f32.gmra.mxu0 %v542
  %v1698 = vpop.f32.mrf.mxu0
  %v1699 = vadd.f32 %v413, %v1698
  %1700 = vmatmul.f32.gmra.mxu0 %v545
  %v1701 = vpop.f32.mrf.mxu0
  %v1702 = vadd.f32 %v418, %v1701
  %1703 = vmatmul.f32.gmra.mxu0 %v548
  %v1704 = vpop.f32.mrf.mxu0
  %v1705 = vadd.f32 %v423, %v1704
  %1706 = vmatmul.f32.gmra.mxu0 %v551
  %v1707 = vpop.f32.mrf.mxu0
  %v1708 = vadd.f32 %v428, %v1707
  %1709 = vmatmul.f32.gmra.mxu0 %v554
  %v1710 = vpop.f32.mrf.mxu0
  %v1711 = vadd.f32 %v433, %v1710
  %1712 = vmatmul.f32.gmra.mxu0 %v557
  %v1713 = vpop.f32.mrf.mxu0
  %v1714 = vadd.f32 %v438, %v1713
  %1715 = vmatmul.f32.gmra.mxu0 %v560
  %v1716 = vpop.f32.mrf.mxu0
  %v1717 = vadd.f32 %v443, %v1716
  %1718 = vmatmul.f32.gmra.mxu0 %v563
  %v1719 = vpop.f32.mrf.mxu0
  %v1720 = vadd.f32 %v448, %v1719
  %1721 = vmatmul.f32.gmra.mxu0 %v566
  %v1722 = vpop.f32.mrf.mxu0
  %v1723 = vadd.f32 %v453, %v1722
  %1724 = vmatmul.f32.gmra.mxu0 %v569
  %v1725 = vpop.f32.mrf.mxu0
  %v1726 = vadd.f32 %v458, %v1725
  %1727 = vmatmul.f32.gmra.mxu0 %v572
  %v1728 = vpop.f32.mrf.mxu0
  %v1729 = vadd.f32 %v463, %v1728
  %1730 = vmatmul.f32.gmra.mxu0 %v575
  %v1731 = vpop.f32.mrf.mxu0
  %v1732 = vadd.f32 %v468, %v1731
  %1733 = vmatmul.f32.gmra.mxu0 %v578
  %v1734 = vpop.f32.mrf.mxu0
  %v1735 = vadd.f32 %v473, %v1734
  %1736 = vmatmul.f32.gmra.mxu0 %v581
  %v1737 = vpop.f32.mrf.mxu0
  %v1738 = vadd.f32 %v478, %v1737
  %1739 = vmatmul.f32.gmra.mxu0 %v584
  %v1740 = vpop.f32.mrf.mxu0
  %v1741 = vadd.f32 %v483, %v1740
  %1742 = vmatmul.f32.gmra.mxu0 %v587
  %v1743 = vpop.f32.mrf.mxu0
  %v1744 = vadd.f32 %v488, %v1743
  %1745 = vmatmul.f32.gmra.mxu0 %v590
  %v1746 = vpop.f32.mrf.mxu0
  %v1747 = vadd.f32 %v493, %v1746
  %1748 = vdwg.mxu0
  %v1749 = vxor.u32 %v1654, 2147483648
  %v1750 = vxor.u32 %v1657, 2147483648
  %v1751 = vxor.u32 %v1660, 2147483648
  %v1752 = vxor.u32 %v1663, 2147483648
  %v1753 = vxor.u32 %v1666, 2147483648
  %v1754 = vxor.u32 %v1669, 2147483648
  %v1755 = vxor.u32 %v1672, 2147483648
  %v1756 = vxor.u32 %v1675, 2147483648
  %v1757 = vmul.f32 %v1749, 1.442695
  %v1758 = vpow.pop %v1757
  %v1759 = vmul.f32 %v1750, 1.442695
  %v1760 = vpow.pop %v1759
  %v1761 = vmul.f32 %v1751, 1.442695
  %v1762 = vpow.pop %v1761
  %v1763 = vmul.f32 %v1752, 1.442695
  %v1764 = vpow.pop %v1763
  %v1765 = vmul.f32 %v1753, 1.442695
  %v1766 = vpow.pop %v1765
  %v1767 = vmul.f32 %v1754, 1.442695
  %v1768 = vpow.pop %v1767
  %v1769 = vmul.f32 %v1755, 1.442695
  %v1770 = vpow.pop %v1769
  %v1771 = vmul.f32 %v1756, 1.442695
  %v1772 = vpow.pop %v1771
  %v1773 = vadd.f32 %v1758, 1.0
  %v1774 = vadd.f32 %v1760, 1.0
  %v1775 = vadd.f32 %v1762, 1.0
  %v1776 = vadd.f32 %v1764, 1.0
  %v1777 = vadd.f32 %v1766, 1.0
  %v1778 = vadd.f32 %v1768, 1.0
  %v1779 = vadd.f32 %v1770, 1.0
  %v1780 = vadd.f32 %v1772, 1.0
  %v1781 = vrcp.pop %v1773
  %v1782 = vmul.f32 %v1773, %v1781
  %v1783 = vsub.f32 1.0, %v1782
  %v1784 = vmul.f32 %v1781, %v1783
  %v1785 = vadd.f32 %v1781, %v1784
  %vm1786 = vweird.f32 %v1773
  %vm1787 = vweird.f32 %v1781
  %vm1788 = vmor %vm1786, %vm1787
  %v1789 = vsel %vm1788, %v1781, %v1785
  %v1790 = vand.u32 2147483647, %v1773
  %vm1791 = vcmp.eq.f32.partialorder %v1790, 8.507059e+37
  %v1792 = vand.u32 %v1773, 2147483648
  %v1793 = vor.u32 1.1754944e-38, %v1792
  %v1794 = vsel %vm1791, %v1793, %v1789
  %v1795 = vmul.f32 1.0, %v1794
  %v1796 = vrcp.pop %v1774
  %v1797 = vmul.f32 %v1774, %v1796
  %v1798 = vsub.f32 1.0, %v1797
  %v1799 = vmul.f32 %v1796, %v1798
  %v1800 = vadd.f32 %v1796, %v1799
  %vm1801 = vweird.f32 %v1774
  %vm1802 = vweird.f32 %v1796
  %vm1803 = vmor %vm1801, %vm1802
  %v1804 = vsel %vm1803, %v1796, %v1800
  %v1805 = vand.u32 2147483647, %v1774
  %vm1806 = vcmp.eq.f32.partialorder %v1805, 8.507059e+37
  %v1807 = vand.u32 %v1774, 2147483648
  %v1808 = vor.u32 1.1754944e-38, %v1807
  %v1809 = vsel %vm1806, %v1808, %v1804
  %v1810 = vmul.f32 1.0, %v1809
  %v1811 = vrcp.pop %v1775
  %v1812 = vmul.f32 %v1775, %v1811
  %v1813 = vsub.f32 1.0, %v1812
  %v1814 = vmul.f32 %v1811, %v1813
  %v1815 = vadd.f32 %v1811, %v1814
  %vm1816 = vweird.f32 %v1775
  %vm1817 = vweird.f32 %v1811
  %vm1818 = vmor %vm1816, %vm1817
  %v1819 = vsel %vm1818, %v1811, %v1815
  %v1820 = vand.u32 2147483647, %v1775
  %vm1821 = vcmp.eq.f32.partialorder %v1820, 8.507059e+37
  %v1822 = vand.u32 %v1775, 2147483648
  %v1823 = vor.u32 1.1754944e-38, %v1822
  %v1824 = vsel %vm1821, %v1823, %v1819
  %v1825 = vmul.f32 1.0, %v1824
  %v1826 = vrcp.pop %v1776
  %v1827 = vmul.f32 %v1776, %v1826
  %v1828 = vsub.f32 1.0, %v1827
  %v1829 = vmul.f32 %v1826, %v1828
  %v1830 = vadd.f32 %v1826, %v1829
  %vm1831 = vweird.f32 %v1776
  %vm1832 = vweird.f32 %v1826
  %vm1833 = vmor %vm1831, %vm1832
  %v1834 = vsel %vm1833, %v1826, %v1830
  %v1835 = vand.u32 2147483647, %v1776
  %vm1836 = vcmp.eq.f32.partialorder %v1835, 8.507059e+37
  %v1837 = vand.u32 %v1776, 2147483648
  %v1838 = vor.u32 1.1754944e-38, %v1837
  %v1839 = vsel %vm1836, %v1838, %v1834
  %v1840 = vmul.f32 1.0, %v1839
  %v1841 = vrcp.pop %v1777
  %v1842 = vmul.f32 %v1777, %v1841
  %v1843 = vsub.f32 1.0, %v1842
  %v1844 = vmul.f32 %v1841, %v1843
  %v1845 = vadd.f32 %v1841, %v1844
  %vm1846 = vweird.f32 %v1777
  %vm1847 = vweird.f32 %v1841
  %vm1848 = vmor %vm1846, %vm1847
  %v1849 = vsel %vm1848, %v1841, %v1845
  %v1850 = vand.u32 2147483647, %v1777
  %vm1851 = vcmp.eq.f32.partialorder %v1850, 8.507059e+37
  %v1852 = vand.u32 %v1777, 2147483648
  %v1853 = vor.u32 1.1754944e-38, %v1852
  %v1854 = vsel %vm1851, %v1853, %v1849
  %v1855 = vmul.f32 1.0, %v1854
  %v1856 = vrcp.pop %v1778
  %v1857 = vmul.f32 %v1778, %v1856
  %v1858 = vsub.f32 1.0, %v1857
  %v1859 = vmul.f32 %v1856, %v1858
  %v1860 = vadd.f32 %v1856, %v1859
  %vm1861 = vweird.f32 %v1778
  %vm1862 = vweird.f32 %v1856
  %vm1863 = vmor %vm1861, %vm1862
  %v1864 = vsel %vm1863, %v1856, %v1860
  %v1865 = vand.u32 2147483647, %v1778
  %vm1866 = vcmp.eq.f32.partialorder %v1865, 8.507059e+37
  %v1867 = vand.u32 %v1778, 2147483648
  %v1868 = vor.u32 1.1754944e-38, %v1867
  %v1869 = vsel %vm1866, %v1868, %v1864
  %v1870 = vmul.f32 1.0, %v1869
  %v1871 = vrcp.pop %v1779
  %v1872 = vmul.f32 %v1779, %v1871
  %v1873 = vsub.f32 1.0, %v1872
  %v1874 = vmul.f32 %v1871, %v1873
  %v1875 = vadd.f32 %v1871, %v1874
  %vm1876 = vweird.f32 %v1779
  %vm1877 = vweird.f32 %v1871
  %vm1878 = vmor %vm1876, %vm1877
  %v1879 = vsel %vm1878, %v1871, %v1875
  %v1880 = vand.u32 2147483647, %v1779
  %vm1881 = vcmp.eq.f32.partialorder %v1880, 8.507059e+37
  %v1882 = vand.u32 %v1779, 2147483648
  %v1883 = vor.u32 1.1754944e-38, %v1882
  %v1884 = vsel %vm1881, %v1883, %v1879
  %v1885 = vmul.f32 1.0, %v1884
  %v1886 = vrcp.pop %v1780
  %v1887 = vmul.f32 %v1780, %v1886
  %v1888 = vsub.f32 1.0, %v1887
  %v1889 = vmul.f32 %v1886, %v1888
  %v1890 = vadd.f32 %v1886, %v1889
  %vm1891 = vweird.f32 %v1780
  %vm1892 = vweird.f32 %v1886
  %vm1893 = vmor %vm1891, %vm1892
  %v1894 = vsel %vm1893, %v1886, %v1890
  %v1895 = vand.u32 2147483647, %v1780
  %vm1896 = vcmp.eq.f32.partialorder %v1895, 8.507059e+37
  %v1897 = vand.u32 %v1780, 2147483648
  %v1898 = vor.u32 1.1754944e-38, %v1897
  %v1899 = vsel %vm1896, %v1898, %v1894
  %v1900 = vmul.f32 1.0, %v1899
  %v1901 = vxor.u32 %v1678, 2147483648
  %v1902 = vxor.u32 %v1681, 2147483648
  %v1903 = vxor.u32 %v1684, 2147483648
  %v1904 = vxor.u32 %v1687, 2147483648
  %v1905 = vxor.u32 %v1690, 2147483648
  %v1906 = vxor.u32 %v1693, 2147483648
  %v1907 = vxor.u32 %v1696, 2147483648
  %v1908 = vxor.u32 %v1699, 2147483648
  %v1909 = vmul.f32 %v1901, 1.442695
  %v1910 = vpow.pop %v1909
  %v1911 = vmul.f32 %v1902, 1.442695
  %v1912 = vpow.pop %v1911
  %v1913 = vmul.f32 %v1903, 1.442695
  %v1914 = vpow.pop %v1913
  %v1915 = vmul.f32 %v1904, 1.442695
  %v1916 = vpow.pop %v1915
  %v1917 = vmul.f32 %v1905, 1.442695
  %v1918 = vpow.pop %v1917
  %v1919 = vmul.f32 %v1906, 1.442695
  %v1920 = vpow.pop %v1919
  %v1921 = vmul.f32 %v1907, 1.442695
  %v1922 = vpow.pop %v1921
  %v1923 = vmul.f32 %v1908, 1.442695
  %v1924 = vpow.pop %v1923
  %v1925 = vadd.f32 %v1910, 1.0
  %v1926 = vadd.f32 %v1912, 1.0
  %v1927 = vadd.f32 %v1914, 1.0
  %v1928 = vadd.f32 %v1916, 1.0
  %v1929 = vadd.f32 %v1918, 1.0
  %v1930 = vadd.f32 %v1920, 1.0
  %v1931 = vadd.f32 %v1922, 1.0
  %v1932 = vadd.f32 %v1924, 1.0
  %v1933 = vrcp.pop %v1925
  %v1934 = vmul.f32 %v1925, %v1933
  %v1935 = vsub.f32 1.0, %v1934
  %v1936 = vmul.f32 %v1933, %v1935
  %v1937 = vadd.f32 %v1933, %v1936
  %vm1938 = vweird.f32 %v1925
  %vm1939 = vweird.f32 %v1933
  %vm1940 = vmor %vm1938, %vm1939
  %v1941 = vsel %vm1940, %v1933, %v1937
  %v1942 = vand.u32 2147483647, %v1925
  %vm1943 = vcmp.eq.f32.partialorder %v1942, 8.507059e+37
  %v1944 = vand.u32 %v1925, 2147483648
  %v1945 = vor.u32 1.1754944e-38, %v1944
  %v1946 = vsel %vm1943, %v1945, %v1941
  %v1947 = vmul.f32 1.0, %v1946
  %v1948 = vrcp.pop %v1926
  %v1949 = vmul.f32 %v1926, %v1948
  %v1950 = vsub.f32 1.0, %v1949
  %v1951 = vmul.f32 %v1948, %v1950
  %v1952 = vadd.f32 %v1948, %v1951
  %vm1953 = vweird.f32 %v1926
  %vm1954 = vweird.f32 %v1948
  %vm1955 = vmor %vm1953, %vm1954
  %v1956 = vsel %vm1955, %v1948, %v1952
  %v1957 = vand.u32 2147483647, %v1926
  %vm1958 = vcmp.eq.f32.partialorder %v1957, 8.507059e+37
  %v1959 = vand.u32 %v1926, 2147483648
  %v1960 = vor.u32 1.1754944e-38, %v1959
  %v1961 = vsel %vm1958, %v1960, %v1956
  %v1962 = vmul.f32 1.0, %v1961
  %v1963 = vrcp.pop %v1927
  %v1964 = vmul.f32 %v1927, %v1963
  %v1965 = vsub.f32 1.0, %v1964
  %v1966 = vmul.f32 %v1963, %v1965
  %v1967 = vadd.f32 %v1963, %v1966
  %vm1968 = vweird.f32 %v1927
  %vm1969 = vweird.f32 %v1963
  %vm1970 = vmor %vm1968, %vm1969
  %v1971 = vsel %vm1970, %v1963, %v1967
  %v1972 = vand.u32 2147483647, %v1927
  %vm1973 = vcmp.eq.f32.partialorder %v1972, 8.507059e+37
  %v1974 = vand.u32 %v1927, 2147483648
  %v1975 = vor.u32 1.1754944e-38, %v1974
  %v1976 = vsel %vm1973, %v1975, %v1971
  %v1977 = vmul.f32 1.0, %v1976
  %v1978 = vrcp.pop %v1928
  %v1979 = vmul.f32 %v1928, %v1978
  %v1980 = vsub.f32 1.0, %v1979
  %v1981 = vmul.f32 %v1978, %v1980
  %v1982 = vadd.f32 %v1978, %v1981
  %vm1983 = vweird.f32 %v1928
  %vm1984 = vweird.f32 %v1978
  %vm1985 = vmor %vm1983, %vm1984
  %v1986 = vsel %vm1985, %v1978, %v1982
  %v1987 = vand.u32 2147483647, %v1928
  %vm1988 = vcmp.eq.f32.partialorder %v1987, 8.507059e+37
  %v1989 = vand.u32 %v1928, 2147483648
  %v1990 = vor.u32 1.1754944e-38, %v1989
  %v1991 = vsel %vm1988, %v1990, %v1986
  %v1992 = vmul.f32 1.0, %v1991
  %v1993 = vrcp.pop %v1929
  %v1994 = vmul.f32 %v1929, %v1993
  %v1995 = vsub.f32 1.0, %v1994
  %v1996 = vmul.f32 %v1993, %v1995
  %v1997 = vadd.f32 %v1993, %v1996
  %vm1998 = vweird.f32 %v1929
  %vm1999 = vweird.f32 %v1993
  %vm2000 = vmor %vm1998, %vm1999
  %v2001 = vsel %vm2000, %v1993, %v1997
  %v2002 = vand.u32 2147483647, %v1929
  %vm2003 = vcmp.eq.f32.partialorder %v2002, 8.507059e+37
  %v2004 = vand.u32 %v1929, 2147483648
  %v2005 = vor.u32 1.1754944e-38, %v2004
  %v2006 = vsel %vm2003, %v2005, %v2001
  %v2007 = vmul.f32 1.0, %v2006
  %v2008 = vrcp.pop %v1930
  %v2009 = vmul.f32 %v1930, %v2008
  %v2010 = vsub.f32 1.0, %v2009
  %v2011 = vmul.f32 %v2008, %v2010
  %v2012 = vadd.f32 %v2008, %v2011
  %vm2013 = vweird.f32 %v1930
  %vm2014 = vweird.f32 %v2008
  %vm2015 = vmor %vm2013, %vm2014
  %v2016 = vsel %vm2015, %v2008, %v2012
  %v2017 = vand.u32 2147483647, %v1930
  %vm2018 = vcmp.eq.f32.partialorder %v2017, 8.507059e+37
  %v2019 = vand.u32 %v1930, 2147483648
  %v2020 = vor.u32 1.1754944e-38, %v2019
  %v2021 = vsel %vm2018, %v2020, %v2016
  %v2022 = vmul.f32 1.0, %v2021
  %v2023 = vrcp.pop %v1931
  %v2024 = vmul.f32 %v1931, %v2023
  %v2025 = vsub.f32 1.0, %v2024
  %v2026 = vmul.f32 %v2023, %v2025
  %v2027 = vadd.f32 %v2023, %v2026
  %vm2028 = vweird.f32 %v1931
  %vm2029 = vweird.f32 %v2023
  %vm2030 = vmor %vm2028, %vm2029
  %v2031 = vsel %vm2030, %v2023, %v2027
  %v2032 = vand.u32 2147483647, %v1931
  %vm2033 = vcmp.eq.f32.partialorder %v2032, 8.507059e+37
  %v2034 = vand.u32 %v1931, 2147483648
  %v2035 = vor.u32 1.1754944e-38, %v2034
  %v2036 = vsel %vm2033, %v2035, %v2031
  %v2037 = vmul.f32 1.0, %v2036
  %v2038 = vrcp.pop %v1932
  %v2039 = vmul.f32 %v1932, %v2038
  %v2040 = vsub.f32 1.0, %v2039
  %v2041 = vmul.f32 %v2038, %v2040
  %v2042 = vadd.f32 %v2038, %v2041
  %vm2043 = vweird.f32 %v1932
  %vm2044 = vweird.f32 %v2038
  %vm2045 = vmor %vm2043, %vm2044
  %v2046 = vsel %vm2045, %v2038, %v2042
  %v2047 = vand.u32 2147483647, %v1932
  %vm2048 = vcmp.eq.f32.partialorder %v2047, 8.507059e+37
  %v2049 = vand.u32 %v1932, 2147483648
  %v2050 = vor.u32 1.1754944e-38, %v2049
  %v2051 = vsel %vm2048, %v2050, %v2046
  %v2052 = vmul.f32 1.0, %v2051
  %v2053 = vtanh.pop %v1702
  %v2054 = vtanh.pop %v1705
  %v2055 = vtanh.pop %v1708
  %v2056 = vtanh.pop %v1711
  %v2057 = vtanh.pop %v1714
  %v2058 = vtanh.pop %v1717
  %v2059 = vtanh.pop %v1720
  %v2060 = vtanh.pop %v1723
  %v2061 = vxor.u32 %v1726, 2147483648
  %v2062 = vxor.u32 %v1729, 2147483648
  %v2063 = vxor.u32 %v1732, 2147483648
  %v2064 = vxor.u32 %v1735, 2147483648
  %v2065 = vxor.u32 %v1738, 2147483648
  %v2066 = vxor.u32 %v1741, 2147483648
  %v2067 = vxor.u32 %v1744, 2147483648
  %v2068 = vxor.u32 %v1747, 2147483648
  %v2069 = vmul.f32 %v2061, 1.442695
  %v2070 = vpow.pop %v2069
  %v2071 = vmul.f32 %v2062, 1.442695
  %v2072 = vpow.pop %v2071
  %v2073 = vmul.f32 %v2063, 1.442695
  %v2074 = vpow.pop %v2073
  %v2075 = vmul.f32 %v2064, 1.442695
  %v2076 = vpow.pop %v2075
  %v2077 = vmul.f32 %v2065, 1.442695
  %v2078 = vpow.pop %v2077
  %v2079 = vmul.f32 %v2066, 1.442695
  %v2080 = vpow.pop %v2079
  %v2081 = vmul.f32 %v2067, 1.442695
  %v2082 = vpow.pop %v2081
  %v2083 = vmul.f32 %v2068, 1.442695
  %v2084 = vpow.pop %v2083
  %v2085 = vadd.f32 %v2070, 1.0
  %v2086 = vadd.f32 %v2072, 1.0
  %v2087 = vadd.f32 %v2074, 1.0
  %v2088 = vadd.f32 %v2076, 1.0
  %v2089 = vadd.f32 %v2078, 1.0
  %v2090 = vadd.f32 %v2080, 1.0
  %v2091 = vadd.f32 %v2082, 1.0
  %v2092 = vadd.f32 %v2084, 1.0
  %v2093 = vrcp.pop %v2085
  %v2094 = vmul.f32 %v2085, %v2093
  %v2095 = vsub.f32 1.0, %v2094
  %v2096 = vmul.f32 %v2093, %v2095
  %v2097 = vadd.f32 %v2093, %v2096
  %vm2098 = vweird.f32 %v2085
  %vm2099 = vweird.f32 %v2093
  %vm2100 = vmor %vm2098, %vm2099
  %v2101 = vsel %vm2100, %v2093, %v2097
  %v2102 = vand.u32 2147483647, %v2085
  %vm2103 = vcmp.eq.f32.partialorder %v2102, 8.507059e+37
  %v2104 = vand.u32 %v2085, 2147483648
  %v2105 = vor.u32 1.1754944e-38, %v2104
  %v2106 = vsel %vm2103, %v2105, %v2101
  %v2107 = vmul.f32 1.0, %v2106
  %v2108 = vrcp.pop %v2086
  %v2109 = vmul.f32 %v2086, %v2108
  %v2110 = vsub.f32 1.0, %v2109
  %v2111 = vmul.f32 %v2108, %v2110
  %v2112 = vadd.f32 %v2108, %v2111
  %vm2113 = vweird.f32 %v2086
  %vm2114 = vweird.f32 %v2108
  %vm2115 = vmor %vm2113, %vm2114
  %v2116 = vsel %vm2115, %v2108, %v2112
  %v2117 = vand.u32 2147483647, %v2086
  %vm2118 = vcmp.eq.f32.partialorder %v2117, 8.507059e+37
  %v2119 = vand.u32 %v2086, 2147483648
  %v2120 = vor.u32 1.1754944e-38, %v2119
  %v2121 = vsel %vm2118, %v2120, %v2116
  %v2122 = vmul.f32 1.0, %v2121
  %v2123 = vrcp.pop %v2087
  %v2124 = vmul.f32 %v2087, %v2123
  %v2125 = vsub.f32 1.0, %v2124
  %v2126 = vmul.f32 %v2123, %v2125
  %v2127 = vadd.f32 %v2123, %v2126
  %vm2128 = vweird.f32 %v2087
  %vm2129 = vweird.f32 %v2123
  %vm2130 = vmor %vm2128, %vm2129
  %v2131 = vsel %vm2130, %v2123, %v2127
  %v2132 = vand.u32 2147483647, %v2087
  %vm2133 = vcmp.eq.f32.partialorder %v2132, 8.507059e+37
  %v2134 = vand.u32 %v2087, 2147483648
  %v2135 = vor.u32 1.1754944e-38, %v2134
  %v2136 = vsel %vm2133, %v2135, %v2131
  %v2137 = vmul.f32 1.0, %v2136
  %v2138 = vrcp.pop %v2088
  %v2139 = vmul.f32 %v2088, %v2138
  %v2140 = vsub.f32 1.0, %v2139
  %v2141 = vmul.f32 %v2138, %v2140
  %v2142 = vadd.f32 %v2138, %v2141
  %vm2143 = vweird.f32 %v2088
  %vm2144 = vweird.f32 %v2138
  %vm2145 = vmor %vm2143, %vm2144
  %v2146 = vsel %vm2145, %v2138, %v2142
  %v2147 = vand.u32 2147483647, %v2088
  %vm2148 = vcmp.eq.f32.partialorder %v2147, 8.507059e+37
  %v2149 = vand.u32 %v2088, 2147483648
  %v2150 = vor.u32 1.1754944e-38, %v2149
  %v2151 = vsel %vm2148, %v2150, %v2146
  %v2152 = vmul.f32 1.0, %v2151
  %v2153 = vrcp.pop %v2089
  %v2154 = vmul.f32 %v2089, %v2153
  %v2155 = vsub.f32 1.0, %v2154
  %v2156 = vmul.f32 %v2153, %v2155
  %v2157 = vadd.f32 %v2153, %v2156
  %vm2158 = vweird.f32 %v2089
  %vm2159 = vweird.f32 %v2153
  %vm2160 = vmor %vm2158, %vm2159
  %v2161 = vsel %vm2160, %v2153, %v2157
  %v2162 = vand.u32 2147483647, %v2089
  %vm2163 = vcmp.eq.f32.partialorder %v2162, 8.507059e+37
  %v2164 = vand.u32 %v2089, 2147483648
  %v2165 = vor.u32 1.1754944e-38, %v2164
  %v2166 = vsel %vm2163, %v2165, %v2161
  %v2167 = vmul.f32 1.0, %v2166
  %v2168 = vrcp.pop %v2090
  %v2169 = vmul.f32 %v2090, %v2168
  %v2170 = vsub.f32 1.0, %v2169
  %v2171 = vmul.f32 %v2168, %v2170
  %v2172 = vadd.f32 %v2168, %v2171
  %vm2173 = vweird.f32 %v2090
  %vm2174 = vweird.f32 %v2168
  %vm2175 = vmor %vm2173, %vm2174
  %v2176 = vsel %vm2175, %v2168, %v2172
  %v2177 = vand.u32 2147483647, %v2090
  %vm2178 = vcmp.eq.f32.partialorder %v2177, 8.507059e+37
  %v2179 = vand.u32 %v2090, 2147483648
  %v2180 = vor.u32 1.1754944e-38, %v2179
  %v2181 = vsel %vm2178, %v2180, %v2176
  %v2182 = vmul.f32 1.0, %v2181
  %v2183 = vrcp.pop %v2091
  %v2184 = vmul.f32 %v2091, %v2183
  %v2185 = vsub.f32 1.0, %v2184
  %v2186 = vmul.f32 %v2183, %v2185
  %v2187 = vadd.f32 %v2183, %v2186
  %vm2188 = vweird.f32 %v2091
  %vm2189 = vweird.f32 %v2183
  %vm2190 = vmor %vm2188, %vm2189
  %v2191 = vsel %vm2190, %v2183, %v2187
  %v2192 = vand.u32 2147483647, %v2091
  %vm2193 = vcmp.eq.f32.partialorder %v2192, 8.507059e+37
  %v2194 = vand.u32 %v2091, 2147483648
  %v2195 = vor.u32 1.1754944e-38, %v2194
  %v2196 = vsel %vm2193, %v2195, %v2191
  %v2197 = vmul.f32 1.0, %v2196
  %v2198 = vrcp.pop %v2092
  %v2199 = vmul.f32 %v2092, %v2198
  %v2200 = vsub.f32 1.0, %v2199
  %v2201 = vmul.f32 %v2198, %v2200
  %v2202 = vadd.f32 %v2198, %v2201
  %vm2203 = vweird.f32 %v2092
  %vm2204 = vweird.f32 %v2198
  %vm2205 = vmor %vm2203, %vm2204
  %v2206 = vsel %vm2205, %v2198, %v2202
  %v2207 = vand.u32 2147483647, %v2092
  %vm2208 = vcmp.eq.f32.partialorder %v2207, 8.507059e+37
  %v2209 = vand.u32 %v2092, 2147483648
  %v2210 = vor.u32 1.1754944e-38, %v2209
  %v2211 = vsel %vm2208, %v2210, %v2206
  %v2212 = vmul.f32 1.0, %v2211
  %v2213 = vmul.f32 %v1947, %v1185
  %v2214 = vmul.f32 %v1962, %v1186
  %v2215 = vmul.f32 %v1977, %v1187
  %v2216 = vmul.f32 %v1992, %v1188
  %v2217 = vmul.f32 %v2007, %v1189
  %v2218 = vmul.f32 %v2022, %v1190
  %v2219 = vmul.f32 %v2037, %v1191
  %v2220 = vmul.f32 %v2052, %v1192
  %v2221 = vmul.f32 %v1795, %v2053
  %v2222 = vmul.f32 %v1810, %v2054
  %v2223 = vmul.f32 %v1825, %v2055
  %v2224 = vmul.f32 %v1840, %v2056
  %v2225 = vmul.f32 %v1855, %v2057
  %v2226 = vmul.f32 %v1870, %v2058
  %v2227 = vmul.f32 %v1885, %v2059
  %v2228 = vmul.f32 %v1900, %v2060
  %v2229 = vadd.f32 %v2213, %v2221
  %v2230 = vadd.f32 %v2214, %v2222
  %v2231 = vadd.f32 %v2215, %v2223
  %v2232 = vadd.f32 %v2216, %v2224
  %v2233 = vadd.f32 %v2217, %v2225
  %v2234 = vadd.f32 %v2218, %v2226
  %v2235 = vadd.f32 %v2219, %v2227
  %v2236 = vadd.f32 %v2220, %v2228
  %v2237 = vxor.u32 %v2229, 2147483648
  %v2238 = vxor.u32 %v2230, 2147483648
  %v2239 = vxor.u32 %v2231, 2147483648
  %v2240 = vxor.u32 %v2232, 2147483648
  %v2241 = vxor.u32 %v2233, 2147483648
  %v2242 = vxor.u32 %v2234, 2147483648
  %v2243 = vxor.u32 %v2235, 2147483648
  %v2244 = vxor.u32 %v2236, 2147483648
  %v2245 = vmul.f32 %v2237, 1.442695
  %v2246 = vpow.pop %v2245
  %v2247 = vmul.f32 %v2238, 1.442695
  %v2248 = vpow.pop %v2247
  %v2249 = vmul.f32 %v2239, 1.442695
  %v2250 = vpow.pop %v2249
  %v2251 = vmul.f32 %v2240, 1.442695
  %v2252 = vpow.pop %v2251
  %v2253 = vmul.f32 %v2241, 1.442695
  %v2254 = vpow.pop %v2253
  %v2255 = vmul.f32 %v2242, 1.442695
  %v2256 = vpow.pop %v2255
  %v2257 = vmul.f32 %v2243, 1.442695
  %v2258 = vpow.pop %v2257
  %v2259 = vmul.f32 %v2244, 1.442695
  %v2260 = vpow.pop %v2259
  %v2261 = vadd.f32 %v2246, 1.0
  %v2262 = vadd.f32 %v2248, 1.0
  %v2263 = vadd.f32 %v2250, 1.0
  %v2264 = vadd.f32 %v2252, 1.0
  %v2265 = vadd.f32 %v2254, 1.0
  %v2266 = vadd.f32 %v2256, 1.0
  %v2267 = vadd.f32 %v2258, 1.0
  %v2268 = vadd.f32 %v2260, 1.0
  %v2269 = vrcp.pop %v2261
  %v2270 = vmul.f32 %v2261, %v2269
  %v2271 = vsub.f32 1.0, %v2270
  %v2272 = vmul.f32 %v2269, %v2271
  %v2273 = vadd.f32 %v2269, %v2272
  %vm2274 = vweird.f32 %v2261
  %vm2275 = vweird.f32 %v2269
  %vm2276 = vmor %vm2274, %vm2275
  %v2277 = vsel %vm2276, %v2269, %v2273
  %v2278 = vand.u32 2147483647, %v2261
  %vm2279 = vcmp.eq.f32.partialorder %v2278, 8.507059e+37
  %v2280 = vand.u32 %v2261, 2147483648
  %v2281 = vor.u32 1.1754944e-38, %v2280
  %v2282 = vsel %vm2279, %v2281, %v2277
  %v2283 = vmul.f32 1.0, %v2282
  %v2284 = vrcp.pop %v2262
  %v2285 = vmul.f32 %v2262, %v2284
  %v2286 = vsub.f32 1.0, %v2285
  %v2287 = vmul.f32 %v2284, %v2286
  %v2288 = vadd.f32 %v2284, %v2287
  %vm2289 = vweird.f32 %v2262
  %vm2290 = vweird.f32 %v2284
  %vm2291 = vmor %vm2289, %vm2290
  %v2292 = vsel %vm2291, %v2284, %v2288
  %v2293 = vand.u32 2147483647, %v2262
  %vm2294 = vcmp.eq.f32.partialorder %v2293, 8.507059e+37
  %v2295 = vand.u32 %v2262, 2147483648
  %v2296 = vor.u32 1.1754944e-38, %v2295
  %v2297 = vsel %vm2294, %v2296, %v2292
  %v2298 = vmul.f32 1.0, %v2297
  %v2299 = vrcp.pop %v2263
  %v2300 = vmul.f32 %v2263, %v2299
  %v2301 = vsub.f32 1.0, %v2300
  %v2302 = vmul.f32 %v2299, %v2301
  %v2303 = vadd.f32 %v2299, %v2302
  %vm2304 = vweird.f32 %v2263
  %vm2305 = vweird.f32 %v2299
  %vm2306 = vmor %vm2304, %vm2305
  %v2307 = vsel %vm2306, %v2299, %v2303
  %v2308 = vand.u32 2147483647, %v2263
  %vm2309 = vcmp.eq.f32.partialorder %v2308, 8.507059e+37
  %v2310 = vand.u32 %v2263, 2147483648
  %v2311 = vor.u32 1.1754944e-38, %v2310
  %v2312 = vsel %vm2309, %v2311, %v2307
  %v2313 = vmul.f32 1.0, %v2312
  %v2314 = vrcp.pop %v2264
  %v2315 = vmul.f32 %v2264, %v2314
  %v2316 = vsub.f32 1.0, %v2315
  %v2317 = vmul.f32 %v2314, %v2316
  %v2318 = vadd.f32 %v2314, %v2317
  %vm2319 = vweird.f32 %v2264
  %vm2320 = vweird.f32 %v2314
  %vm2321 = vmor %vm2319, %vm2320
  %v2322 = vsel %vm2321, %v2314, %v2318
  %v2323 = vand.u32 2147483647, %v2264
  %vm2324 = vcmp.eq.f32.partialorder %v2323, 8.507059e+37
  %v2325 = vand.u32 %v2264, 2147483648
  %v2326 = vor.u32 1.1754944e-38, %v2325
  %v2327 = vsel %vm2324, %v2326, %v2322
  %v2328 = vmul.f32 1.0, %v2327
  %v2329 = vrcp.pop %v2265
  %v2330 = vmul.f32 %v2265, %v2329
  %v2331 = vsub.f32 1.0, %v2330
  %v2332 = vmul.f32 %v2329, %v2331
  %v2333 = vadd.f32 %v2329, %v2332
  %vm2334 = vweird.f32 %v2265
  %vm2335 = vweird.f32 %v2329
  %vm2336 = vmor %vm2334, %vm2335
  %v2337 = vsel %vm2336, %v2329, %v2333
  %v2338 = vand.u32 2147483647, %v2265
  %vm2339 = vcmp.eq.f32.partialorder %v2338, 8.507059e+37
  %v2340 = vand.u32 %v2265, 2147483648
  %v2341 = vor.u32 1.1754944e-38, %v2340
  %v2342 = vsel %vm2339, %v2341, %v2337
  %v2343 = vmul.f32 1.0, %v2342
  %v2344 = vrcp.pop %v2266
  %v2345 = vmul.f32 %v2266, %v2344
  %v2346 = vsub.f32 1.0, %v2345
  %v2347 = vmul.f32 %v2344, %v2346
  %v2348 = vadd.f32 %v2344, %v2347
  %vm2349 = vweird.f32 %v2266
  %vm2350 = vweird.f32 %v2344
  %vm2351 = vmor %vm2349, %vm2350
  %v2352 = vsel %vm2351, %v2344, %v2348
  %v2353 = vand.u32 2147483647, %v2266
  %vm2354 = vcmp.eq.f32.partialorder %v2353, 8.507059e+37
  %v2355 = vand.u32 %v2266, 2147483648
  %v2356 = vor.u32 1.1754944e-38, %v2355
  %v2357 = vsel %vm2354, %v2356, %v2352
  %v2358 = vmul.f32 1.0, %v2357
  %v2359 = vrcp.pop %v2267
  %v2360 = vmul.f32 %v2267, %v2359
  %v2361 = vsub.f32 1.0, %v2360
  %v2362 = vmul.f32 %v2359, %v2361
  %v2363 = vadd.f32 %v2359, %v2362
  %vm2364 = vweird.f32 %v2267
  %vm2365 = vweird.f32 %v2359
  %vm2366 = vmor %vm2364, %vm2365
  %v2367 = vsel %vm2366, %v2359, %v2363
  %v2368 = vand.u32 2147483647, %v2267
  %vm2369 = vcmp.eq.f32.partialorder %v2368, 8.507059e+37
  %v2370 = vand.u32 %v2267, 2147483648
  %v2371 = vor.u32 1.1754944e-38, %v2370
  %v2372 = vsel %vm2369, %v2371, %v2367
  %v2373 = vmul.f32 1.0, %v2372
  %v2374 = vrcp.pop %v2268
  %v2375 = vmul.f32 %v2268, %v2374
  %v2376 = vsub.f32 1.0, %v2375
  %v2377 = vmul.f32 %v2374, %v2376
  %v2378 = vadd.f32 %v2374, %v2377
  %vm2379 = vweird.f32 %v2268
  %vm2380 = vweird.f32 %v2374
  %vm2381 = vmor %vm2379, %vm2380
  %v2382 = vsel %vm2381, %v2374, %v2378
  %v2383 = vand.u32 2147483647, %v2268
  %vm2384 = vcmp.eq.f32.partialorder %v2383, 8.507059e+37
  %v2385 = vand.u32 %v2268, 2147483648
  %v2386 = vor.u32 1.1754944e-38, %v2385
  %v2387 = vsel %vm2384, %v2386, %v2382
  %v2388 = vmul.f32 1.0, %v2387
  %v2389 = vmul.f32 %v2107, %v2283
  %v2390 = vmul.f32 %v2122, %v2298
  %v2391 = vmul.f32 %v2137, %v2313
  %v2392 = vmul.f32 %v2152, %v2328
  %v2393 = vmul.f32 %v2167, %v2343
  %v2394 = vmul.f32 %v2182, %v2358
  %v2395 = vmul.f32 %v2197, %v2373
  %v2396 = vmul.f32 %v2212, %v2388
  %v2398 = vsel %vm1353, %v2389, 0
  %v2401 = vsel %vm1353, %v2390, 0
  %v2404 = vsel %vm1353, %v2391, 0
  %v2407 = vsel %vm1353, %v2392, 0
  %v2410 = vsel %vm1353, %v2393, 0
  %v2413 = vsel %vm1353, %v2394, 0
  %v2416 = vsel %vm1353, %v2395, 0
  %v2419 = vsel %vm1353, %v2396, 0
  %2421 = vmatpush.msra.mxu0 0.0
  %2422 = vmatpush.msra.mxu0 0.0
  %2423 = vmatpush.msra.mxu0 0.0
  %2424 = vmatpush.msra.mxu0 0.0
  %2425 = vmatpush.msra.mxu0 0.0
  %2426 = vmatpush.msra.mxu0 0.0
  %2427 = vmatpush.msra.mxu0 0.0
  %2428 = vmatpush.msra.mxu0 0.0
  %2429 = vmatpush.msra.mxu0 0.0
  %2430 = vmatpush.msra.mxu0 0.0
  %2431 = vmatpush.msra.mxu0 0.0
  %2432 = vmatpush.msra.mxu0 0.0
  %2433 = vmatpush.msra.mxu0 0.0
  %2434 = vmatpush.msra.mxu0 0.0
  %2435 = vmatpush.msra.mxu0 0.0
  %2436 = vmatpush.msra.mxu0 %v1380
  %2437 = vmatmul.f32.gmra.mxu0 %v2398
  %v2438 = vpop.f32.mrf.mxu0
  %v2439 = vadd.f32 0.0, %v2438
  %2440 = vmatmul.f32.gmra.mxu0 %v2401
  %v2441 = vpop.f32.mrf.mxu0
  %v2442 = vadd.f32 0.0, %v2441
  %2443 = vmatmul.f32.gmra.mxu0 %v2404
  %v2444 = vpop.f32.mrf.mxu0
  %v2445 = vadd.f32 0.0, %v2444
  %2446 = vmatmul.f32.gmra.mxu0 %v2407
  %v2447 = vpop.f32.mrf.mxu0
  %v2448 = vadd.f32 0.0, %v2447
  %2449 = vmatmul.f32.gmra.mxu0 %v2410
  %v2450 = vpop.f32.mrf.mxu0
  %v2451 = vadd.f32 0.0, %v2450
  %2452 = vmatmul.f32.gmra.mxu0 %v2413
  %v2453 = vpop.f32.mrf.mxu0
  %v2454 = vadd.f32 0.0, %v2453
  %2455 = vmatmul.f32.gmra.mxu0 %v2416
  %v2456 = vpop.f32.mrf.mxu0
  %v2457 = vadd.f32 0.0, %v2456
  %2458 = vmatmul.f32.gmra.mxu0 %v2419
  %v2459 = vpop.f32.mrf.mxu0
  %v2460 = vadd.f32 0.0, %v2459
  %2461 = vdwg.mxu0
  %v2462 = vmul.f32 %v1498, %v2439
  %v2463 = vmul.f32 %v1501, %v2442
  %v2464 = vmul.f32 %v1504, %v2445
  %v2465 = vmul.f32 %v1507, %v2448
  %v2466 = vmul.f32 %v1510, %v2451
  %v2467 = vmul.f32 %v1513, %v2454
  %v2468 = vmul.f32 %v1516, %v2457
  %v2469 = vmul.f32 %v1519, %v2460
  %v2470 = vadd.f32 %v2462, %v1439
  %v2471 = vadd.f32 %v2463, %v1440
  %v2472 = vadd.f32 %v2464, %v1441
  %v2473 = vadd.f32 %v2465, %v1442
  %v2474 = vadd.f32 %v2466, %v1443
  %v2475 = vadd.f32 %v2467, %v1444
  %v2476 = vadd.f32 %v2468, %v1445
  %v2477 = vadd.f32 %v2469, %v1446
  %v2478 = vmax.f32 %v2470, 0.0
  %v2479 = vmax.f32 %v2471, 0.0
  %v2480 = vmax.f32 %v2472, 0.0
  %v2481 = vmax.f32 %v2473, 0.0
  %v2482 = vmax.f32 %v2474, 0.0
  %v2483 = vmax.f32 %v2475, 0.0
  %v2484 = vmax.f32 %v2476, 0.0
  %v2485 = vmax.f32 %v2477, 0.0
  %2486 = vst [vmem:[%s8] sm:$0xff] %v2478
  %2487 = vst [vmem:[%s8 + $0x8] sm:$0xff] %v2479
  %2488 = vst [vmem:[%s8 + $0x10] sm:$0xff] %v2480
  %2489 = vst [vmem:[%s8 + $0x18] sm:$0xff] %v2481
  %2490 = vst [vmem:[%s8 + $0x20] sm:$0xff] %v2482
  %2491 = vst [vmem:[%s8 + $0x28] sm:$0xff] %v2483
  %2492 = vst [vmem:[%s8 + $0x30] sm:$0xff] %v2484
  %2493 = vst [vmem:[%s8 + $0x38] sm:$0xff] %v2485
  // Predicated region
  $region34: #{attention_forward.1} parent=0 // pred_check
    _
  $region35: #{attention_forward.1} parent=0 // pred_check_branch
    %2495 = sbr.rel (0) target = $region37
  $region36: #{attention_forward.1} parent=0 // pred_region
    _
  $region37: #{attention_forward.1} parent=0 // pred_fallthru
    _
  // Predicated region
  $region38: #{attention_forward.1} parent=0 // pred_check
    _
  $region39: #{attention_forward.1} parent=0 // pred_check_branch
    %2497 = sbr.rel (0) target = $region41
  $region40: #{attention_forward.1} parent=0 // pred_region
    _
  $region41: #{attention_forward.1} parent=0 // pred_fallthru
    _

</llo_original>
